<compile_context>
chip_gen: v7x
topology: tpu7x:2x2x1
jax: 0.10.0
libtpu: 0.0.40
codegen_flags: <defaults>
</compile_context>

<pallas_src>
import functools

import numpy as np

import jax
import jax.numpy as jnp
from jax.experimental import pallas as pl
from jax.experimental.pallas import tpu as pltpu


def _tcn_kernel(x_ref, s_ref, w1_ref, w2_ref, pp_ref, out_ref, *,
                N, Cin, Cout, K, L, L1, L2, eps):
    f32 = jnp.float32
    x = x_ref[...].astype(f32)                  # (N, Cin, L)   channels-major
    pp = pp_ref[...].astype(f32)                # (Cout, 8)     param slab

    def cvec(j):                                # per-channel vector -> (1, Cout, 1)
        return pp[:, j:j + 1][None, :, :]

    b1, a1, g1, be1 = cvec(0), cvec(1), cvec(2), cvec(3)
    b2, a2, g2, be2 = cvec(4), cvec(5), cvec(6), cvec(7)

    # ---- conv1 gather (stride 2 + dilation) as one batched MXU dot ----
    # S[i, k*L1 + t] = 1 iff i == 2*t + k*dilation  -> lane-dense im2col.
    sel = jnp.broadcast_to(s_ref[...][None], (N, L, K * L1))
    cols = jnp.einsum('ncl,nlm->ncm', x, sel,
                      preferred_element_type=f32)          # (N, Cin, K*L1)

    # ---- conv1 channel contraction: one batched matmul per tap + bias ----
    y = jnp.zeros((N, Cout, L1), f32) + b1
    for k in range(K):
        w1k = jnp.broadcast_to(w1_ref[k][None], (N, Cout, Cin))
        xk = cols[:, :, k * L1:(k + 1) * L1]               # (N, Cin, L1)
        y = y + jnp.einsum('noc,ncl->nol', w1k, xk,
                           preferred_element_type=f32)

    # PReLU1 (per-channel slope)
    y = jnp.where(y > 0, y, a1 * y)

    # ---- BN1 (training mode, biased variance): single whole-tensor stats,
    #      mean-subtracted two-pass variance (no E[x^2]-E[x]^2 cancellation). ----
    inv1 = 1.0 / float(N * L1)
    mean1 = jnp.sum(jnp.sum(y, axis=2, keepdims=True), axis=0, keepdims=True) * inv1
    yc = y - mean1
    var1 = jnp.sum(jnp.sum(yc * yc, axis=2, keepdims=True), axis=0, keepdims=True) * inv1
    y1 = yc * (jax.lax.rsqrt(var1 + eps) * g1) + be1

    # ---- conv2 (stride 1, dilation 1): one batched matmul per tap + bias ----
    z = jnp.zeros((N, Cout, L2), f32) + b2
    for k in range(K):
        w2k = jnp.broadcast_to(w2_ref[k][None], (N, Cout, Cout))
        yk = y1[:, :, k:k + L2]                            # (N, Cout, L2)
        z = z + jnp.einsum('noc,ncl->nol', w2k, yk,
                           preferred_element_type=f32)

    # PReLU2
    z = jnp.where(z > 0, z, a2 * z)

    # ---- BN2: whole-tensor stats, applied once, single store ----
    inv2 = 1.0 / float(N * L2)
    mean2 = jnp.sum(jnp.sum(z, axis=2, keepdims=True), axis=0, keepdims=True) * inv2
    zc = z - mean2
    var2 = jnp.sum(jnp.sum(zc * zc, axis=2, keepdims=True), axis=0, keepdims=True) * inv2
    out = zc * (jax.lax.rsqrt(var2 + eps) * g2) + be2

    out_ref[...] = out.astype(out_ref.dtype)


def tcn_block_forward(x, params, *, kernel_size, dilation, eps=1e-5):
    """x: (N, Cin, L) float32 (PyTorch NCL).  Returns (N, Cout, L2)."""
    N, Cin, L = x.shape
    K = kernel_size
    d = dilation
    stride = 2
    Cout = params["w1"].shape[0]
    L1 = (L - d * (K - 1) - 1) // stride + 1     # conv1 output length
    L2 = L1 - (K - 1)                            # conv2 output length
    assert L1 > 0 and L2 > 0, (L1, L2)
    # Largest input index touched by conv1 must be in range (no pad rows exist).
    assert stride * (L1 - 1) + d * (K - 1) <= L - 1

    # Constant 0/1 gather matrix: one MXU dot in-kernel replaces the strided /
    # dilated im2col (weight-only preprocessing, built once on host).
    S = np.zeros((L, K * L1), np.float32)
    for k in range(K):
        for t in range(L1):
            S[stride * t + k * d, k * L1 + t] = 1.0
    S = jnp.asarray(S)

    # Per-tap weight matrices: (K, Cout, Cin) / (K, Cout, Cout).
    w1 = jnp.transpose(params["w1"].astype(jnp.float32), (2, 0, 1))
    w2 = jnp.transpose(params["w2"].astype(jnp.float32), (2, 0, 1))

    # All 8 per-channel parameter vectors in one (Cout, 8) slab -> one DMA,
    # channels on sublanes (broadcastable over (N, Cout, L') without relayout).
    pp = jnp.stack([params["b1"], params["a1"], params["g1"], params["be1"],
                    params["b2"], params["a2"], params["g2"], params["be2"]],
                   axis=1).astype(jnp.float32)

    kernel = functools.partial(_tcn_kernel, N=N, Cin=Cin, Cout=Cout,
                               K=K, L=L, L1=L1, L2=L2, eps=eps)

    vmem = pl.BlockSpec(memory_space=pltpu.MemorySpace.VMEM)
    out = pl.pallas_call(
        kernel,
        out_shape=jax.ShapeDtypeStruct((N, Cout, L2), jnp.float32),
        in_specs=[vmem] * 5,
        out_specs=vmem,
        compiler_params=pltpu.CompilerParams(
            vmem_limit_bytes=16 * 1024 * 1024),
    )(x.astype(jnp.float32), S, w1, w2, pp)
    return out                                   # already (N, Cout, L2)


def tcn_block_reference(x, params, *, kernel_size, dilation, eps=1e-5):
    """Pure-JAX reference using lax.conv_general_dilated (independent of kernel math)."""
    dn = ("NCH", "OIH", "NCH")

    def prelu(y, a):
        return jnp.where(y > 0, y, a[None, :, None] * y)

    def bn(y, g, b):
        m = jnp.mean(y, axis=(0, 2), keepdims=True)
        v = jnp.mean((y - m) ** 2, axis=(0, 2), keepdims=True)
        return (y - m) / jnp.sqrt(v + eps) * g[None, :, None] + b[None, :, None]

    y = jax.lax.conv_general_dilated(x, params["w1"], window_strides=(2,),
                                     padding="VALID", rhs_dilation=(dilation,),
                                     dimension_numbers=dn)
    y = y + params["b1"][None, :, None]
    y = bn(prelu(y, params["a1"]), params["g1"], params["be1"])
    y = jax.lax.conv_general_dilated(y, params["w2"], window_strides=(1,),
                                     padding="VALID", rhs_dilation=(1,),
                                     dimension_numbers=dn)
    y = y + params["b2"][None, :, None]
    y = bn(prelu(y, params["a2"]), params["g2"], params["be2"])
    return y


def init_params(key, in_channels, out_channels, kernel_size):
    ks = jax.random.split(key, 8)
    f = jnp.float32
    return {
        "w1": 0.1 * jax.random.normal(ks[0], (out_channels, in_channels, kernel_size), f),
        "b1": 0.1 * jax.random.normal(ks[1], (out_channels,), f),
        "a1": jnp.full((out_channels,), 0.25, f)
              + 0.05 * jax.random.normal(ks[2], (out_channels,), f),     # PReLU slopes
        "g1": 1.0 + 0.1 * jax.random.normal(ks[3], (out_channels,), f),  # BN gamma
        "be1": 0.1 * jax.random.normal(ks[4], (out_channels,), f),       # BN beta
        "w2": 0.1 * jax.random.normal(ks[5], (out_channels, out_channels, kernel_size), f),
        "b2": 0.1 * jax.random.normal(ks[6], (out_channels,), f),
        "a2": jnp.full((out_channels,), 0.25, f),
        "g2": jnp.ones((out_channels,), f),
        "be2": 0.05 * jax.random.normal(ks[7], (out_channels,), f),
    }


if __name__ == "__main__":
    # Small deterministic example: TCNBlock(in_channels=4, out_channels=8,
    # kernel_size=3, dilation=2) on input x of shape (N=2, C=4, L=32).
    key = jax.random.PRNGKey(0)
    kx, kp = jax.random.split(key)

    N, Cin, L = 2, 4, 32
    Cout, K, dil = 8, 3, 2

    x = jax.random.normal(kx, (N, Cin, L), jnp.float32)
    params = init_params(kp, Cin, Cout, K)

    out = jax.block_until_ready(
        tcn_block_forward(x, params, kernel_size=K, dilation=dil))
    ref = jax.block_until_ready(
        tcn_block_reference(x, params, kernel_size=K, dilation=dil))

    assert out.shape == ref.shape, (out.shape, ref.shape)
    err = float(jnp.max(jnp.abs(out - ref)))
    assert err < 1e-4, f"max abs error {err}"

    # TODO(synk): BatchNorm running_mean/running_var state updates (training-mode
    # side effect) are not modeled; only the returned tensor is reproduced.
    print("KERNEL_OK")
</pallas_src>

<mosaic_0001>
module attributes {stable_mosaic.version = 11 : i64} {
  func.func @_tcn_kernel(%arg0: memref<2x4x32xf32, #tpu.memory_space<vmem>>, %arg1: memref<32x42xf32, #tpu.memory_space<vmem>>, %arg2: memref<3x8x4xf32, #tpu.memory_space<vmem>>, %arg3: memref<3x8x8xf32, #tpu.memory_space<vmem>>, %arg4: memref<8x8xf32, #tpu.memory_space<vmem>>, %arg5: memref<2x8x12xf32, #tpu.memory_space<vmem>>) attributes {dimension_semantics = [], scalar_prefetch = 0 : i64, scratch_operands = 0 : i64, tpu.core_type = #tpu.core_type<tc>} {
    %c0 = arith.constant 0 : index
    %c0_0 = arith.constant 0 : index
    %c0_1 = arith.constant 0 : index
    %0 = vector.load %arg0[%c0, %c0_0, %c0_1] : memref<2x4x32xf32, #tpu.memory_space<vmem>>, vector<2x4x32xf32>
    %c0_2 = arith.constant 0 : index
    %c0_3 = arith.constant 0 : index
    %1 = vector.load %arg4[%c0_2, %c0_3] : memref<8x8xf32, #tpu.memory_space<vmem>>, vector<8x8xf32>
    %2 = vector.extract_strided_slice %1 {offsets = [0, 0], sizes = [8, 1], strides = [1, 1]} : vector<8x8xf32> to vector<8x1xf32>
    %3 = vector.shape_cast %2 : vector<8x1xf32> to vector<1x8x1xf32>
    %4 = vector.extract_strided_slice %1 {offsets = [0, 1], sizes = [8, 1], strides = [1, 1]} : vector<8x8xf32> to vector<8x1xf32>
    %5 = vector.shape_cast %4 : vector<8x1xf32> to vector<1x8x1xf32>
    %6 = vector.extract_strided_slice %1 {offsets = [0, 2], sizes = [8, 1], strides = [1, 1]} : vector<8x8xf32> to vector<8x1xf32>
    %7 = vector.shape_cast %6 : vector<8x1xf32> to vector<1x8x1xf32>
    %8 = vector.extract_strided_slice %1 {offsets = [0, 3], sizes = [8, 1], strides = [1, 1]} : vector<8x8xf32> to vector<8x1xf32>
    %9 = vector.shape_cast %8 : vector<8x1xf32> to vector<1x8x1xf32>
    %10 = vector.extract_strided_slice %1 {offsets = [0, 4], sizes = [8, 1], strides = [1, 1]} : vector<8x8xf32> to vector<8x1xf32>
    %11 = vector.shape_cast %10 : vector<8x1xf32> to vector<1x8x1xf32>
    %12 = vector.extract_strided_slice %1 {offsets = [0, 5], sizes = [8, 1], strides = [1, 1]} : vector<8x8xf32> to vector<8x1xf32>
    %13 = vector.shape_cast %12 : vector<8x1xf32> to vector<1x8x1xf32>
    %14 = vector.extract_strided_slice %1 {offsets = [0, 6], sizes = [8, 1], strides = [1, 1]} : vector<8x8xf32> to vector<8x1xf32>
    %15 = vector.shape_cast %14 : vector<8x1xf32> to vector<1x8x1xf32>
    %16 = vector.extract_strided_slice %1 {offsets = [0, 7], sizes = [8, 1], strides = [1, 1]} : vector<8x8xf32> to vector<8x1xf32>
    %17 = vector.shape_cast %16 : vector<8x1xf32> to vector<1x8x1xf32>
    %c0_4 = arith.constant 0 : index
    %c0_5 = arith.constant 0 : index
    %18 = vector.load %arg1[%c0_4, %c0_5] : memref<32x42xf32, #tpu.memory_space<vmem>>, vector<32x42xf32>
    %19 = vector.shape_cast %18 : vector<32x42xf32> to vector<1x32x42xf32>
    %20 = vector.shape_cast %19 : vector<1x32x42xf32> to vector<1x32x42xf32>
    %21 = vector.broadcast %20 : vector<1x32x42xf32> to vector<2x32x42xf32>
    "tpu.trace_start"() <{level = 10 : i32, message = "ncl,nlm->ncm"}> : () -> ()
    %cst = arith.constant dense<0.000000e+00> : vector<2x4x42xf32>
    %22 = tpu.matmul %0, %21, %cst {dimension_numbers = #tpu.dot_dimension_numbers<[2], [1], [1], [2], [0, 0, 0, 1, 1, 2], [0], [0]>} : vector<2x4x32xf32>, vector<2x32x42xf32>, vector<2x4x42xf32> -> vector<2x4x42xf32>
    %cst_6 = arith.constant 0.000000e+00 : f32
    "tpu.trace_stop"() : () -> ()
    %23 = vector.broadcast %cst_6 : f32 to vector<2x8x14xf32>
    %24 = vector.broadcast %3 : vector<1x8x1xf32> to vector<2x8x14xf32>
    %25 = arith.addf %23, %24 : vector<2x8x14xf32>
    %c0_7 = arith.constant 0 : index
    %c0_8 = arith.constant 0 : index
    %c0_9 = arith.constant 0 : index
    %26 = vector.load %arg2[%c0_7, %c0_8, %c0_9] : memref<3x8x4xf32, #tpu.memory_space<vmem>>, vector<1x8x4xf32>
    %27 = vector.shape_cast %26 : vector<1x8x4xf32> to vector<8x4xf32>
    %28 = vector.shape_cast %27 : vector<8x4xf32> to vector<1x8x4xf32>
    %29 = vector.shape_cast %28 : vector<1x8x4xf32> to vector<1x8x4xf32>
    %30 = vector.broadcast %29 : vector<1x8x4xf32> to vector<2x8x4xf32>
    %31 = vector.extract_strided_slice %22 {offsets = [0, 0, 0], sizes = [2, 4, 14], strides = [1, 1, 1]} : vector<2x4x42xf32> to vector<2x4x14xf32>
    "tpu.trace_start"() <{level = 10 : i32, message = "noc,ncl->nol"}> : () -> ()
    %cst_10 = arith.constant dense<0.000000e+00> : vector<2x8x14xf32>
    %32 = tpu.matmul %30, %31, %cst_10 {dimension_numbers = #tpu.dot_dimension_numbers<[2], [1], [1], [2], [0, 0, 0, 1, 1, 2], [0], [0]>} : vector<2x8x4xf32>, vector<2x4x14xf32>, vector<2x8x14xf32> -> vector<2x8x14xf32>
    "tpu.trace_stop"() : () -> ()
    %33 = arith.addf %25, %32 : vector<2x8x14xf32>
    %c1 = arith.constant 1 : index
    %c0_11 = arith.constant 0 : index
    %c0_12 = arith.constant 0 : index
    %34 = vector.load %arg2[%c1, %c0_11, %c0_12] : memref<3x8x4xf32, #tpu.memory_space<vmem>>, vector<1x8x4xf32>
    %35 = vector.shape_cast %34 : vector<1x8x4xf32> to vector<8x4xf32>
    %36 = vector.shape_cast %35 : vector<8x4xf32> to vector<1x8x4xf32>
    %37 = vector.shape_cast %36 : vector<1x8x4xf32> to vector<1x8x4xf32>
    %38 = vector.broadcast %37 : vector<1x8x4xf32> to vector<2x8x4xf32>
    %39 = vector.extract_strided_slice %22 {offsets = [0, 0, 14], sizes = [2, 4, 14], strides = [1, 1, 1]} : vector<2x4x42xf32> to vector<2x4x14xf32>
    "tpu.trace_start"() <{level = 10 : i32, message = "noc,ncl->nol"}> : () -> ()
    %cst_13 = arith.constant dense<0.000000e+00> : vector<2x8x14xf32>
    %40 = tpu.matmul %38, %39, %cst_13 {dimension_numbers = #tpu.dot_dimension_numbers<[2], [1], [1], [2], [0, 0, 0, 1, 1, 2], [0], [0]>} : vector<2x8x4xf32>, vector<2x4x14xf32>, vector<2x8x14xf32> -> vector<2x8x14xf32>
    "tpu.trace_stop"() : () -> ()
    %41 = arith.addf %33, %40 : vector<2x8x14xf32>
    %c2 = arith.constant 2 : index
    %c0_14 = arith.constant 0 : index
    %c0_15 = arith.constant 0 : index
    %42 = vector.load %arg2[%c2, %c0_14, %c0_15] : memref<3x8x4xf32, #tpu.memory_space<vmem>>, vector<1x8x4xf32>
    %43 = vector.shape_cast %42 : vector<1x8x4xf32> to vector<8x4xf32>
    %44 = vector.shape_cast %43 : vector<8x4xf32> to vector<1x8x4xf32>
    %45 = vector.shape_cast %44 : vector<1x8x4xf32> to vector<1x8x4xf32>
    %46 = vector.broadcast %45 : vector<1x8x4xf32> to vector<2x8x4xf32>
    %47 = vector.extract_strided_slice %22 {offsets = [0, 0, 28], sizes = [2, 4, 14], strides = [1, 1, 1]} : vector<2x4x42xf32> to vector<2x4x14xf32>
    "tpu.trace_start"() <{level = 10 : i32, message = "noc,ncl->nol"}> : () -> ()
    %cst_16 = arith.constant dense<0.000000e+00> : vector<2x8x14xf32>
    %48 = tpu.matmul %46, %47, %cst_16 {dimension_numbers = #tpu.dot_dimension_numbers<[2], [1], [1], [2], [0, 0, 0, 1, 1, 2], [0], [0]>} : vector<2x8x4xf32>, vector<2x4x14xf32>, vector<2x8x14xf32> -> vector<2x8x14xf32>
    "tpu.trace_stop"() : () -> ()
    %49 = arith.addf %41, %48 : vector<2x8x14xf32>
    %cst_17 = arith.constant 0.000000e+00 : f32
    %50 = vector.broadcast %cst_17 : f32 to vector<2x8x14xf32>
    %51 = arith.cmpf ogt, %49, %50 : vector<2x8x14xf32>
    %52 = vector.broadcast %5 : vector<1x8x1xf32> to vector<2x8x14xf32>
    %53 = arith.mulf %52, %49 : vector<2x8x14xf32>
    %54 = arith.select %51, %49, %53 : vector<2x8x14xi1>, vector<2x8x14xf32>
    %cst_18 = arith.constant dense<0.000000e+00> : vector<2x8xf32>
    %55 = vector.multi_reduction <add>, %54, %cst_18 [2] : vector<2x8x14xf32> to vector<2x8xf32>
    %56 = vector.shape_cast %55 : vector<2x8xf32> to vector<2x8x1xf32>
    %cst_19 = arith.constant dense<0.000000e+00> : vector<8x1xf32>
    %57 = vector.multi_reduction <add>, %56, %cst_19 [0] : vector<2x8x1xf32> to vector<8x1xf32>
    %58 = vector.shape_cast %57 : vector<8x1xf32> to vector<1x8x1xf32>
    %cst_20 = arith.constant 0.0357142873 : f32
    %59 = vector.broadcast %cst_20 : f32 to vector<1x8x1xf32>
    %60 = arith.mulf %58, %59 : vector<1x8x1xf32>
    %61 = vector.broadcast %60 : vector<1x8x1xf32> to vector<2x8x14xf32>
    %62 = arith.subf %54, %61 : vector<2x8x14xf32>
    %63 = arith.mulf %62, %62 : vector<2x8x14xf32>
    %cst_21 = arith.constant dense<0.000000e+00> : vector<2x8xf32>
    %64 = vector.multi_reduction <add>, %63, %cst_21 [2] : vector<2x8x14xf32> to vector<2x8xf32>
    %65 = vector.shape_cast %64 : vector<2x8xf32> to vector<2x8x1xf32>
    %cst_22 = arith.constant dense<0.000000e+00> : vector<8x1xf32>
    %66 = vector.multi_reduction <add>, %65, %cst_22 [0] : vector<2x8x1xf32> to vector<8x1xf32>
    %67 = vector.shape_cast %66 : vector<8x1xf32> to vector<1x8x1xf32>
    %cst_23 = arith.constant 0.0357142873 : f32
    %68 = vector.broadcast %cst_23 : f32 to vector<1x8x1xf32>
    %69 = arith.mulf %67, %68 : vector<1x8x1xf32>
    %cst_24 = arith.constant 9.99999974E-6 : f32
    %70 = vector.broadcast %cst_24 : f32 to vector<1x8x1xf32>
    %71 = arith.addf %69, %70 : vector<1x8x1xf32>
    %72 = math.rsqrt %71 : vector<1x8x1xf32>
    %73 = arith.mulf %72, %7 : vector<1x8x1xf32>
    %74 = vector.broadcast %73 : vector<1x8x1xf32> to vector<2x8x14xf32>
    %75 = arith.mulf %62, %74 : vector<2x8x14xf32>
    %76 = vector.broadcast %9 : vector<1x8x1xf32> to vector<2x8x14xf32>
    %77 = arith.addf %75, %76 : vector<2x8x14xf32>
    %cst_25 = arith.constant 0.000000e+00 : f32
    %78 = vector.broadcast %cst_25 : f32 to vector<2x8x12xf32>
    %79 = vector.broadcast %11 : vector<1x8x1xf32> to vector<2x8x12xf32>
    %80 = arith.addf %78, %79 : vector<2x8x12xf32>
    %c0_26 = arith.constant 0 : index
    %c0_27 = arith.constant 0 : index
    %c0_28 = arith.constant 0 : index
    %81 = vector.load %arg3[%c0_26, %c0_27, %c0_28] : memref<3x8x8xf32, #tpu.memory_space<vmem>>, vector<1x8x8xf32>
    %82 = vector.shape_cast %81 : vector<1x8x8xf32> to vector<8x8xf32>
    %83 = vector.shape_cast %82 : vector<8x8xf32> to vector<1x8x8xf32>
    %84 = vector.shape_cast %83 : vector<1x8x8xf32> to vector<1x8x8xf32>
    %85 = vector.broadcast %84 : vector<1x8x8xf32> to vector<2x8x8xf32>
    %86 = vector.extract_strided_slice %77 {offsets = [0, 0, 0], sizes = [2, 8, 12], strides = [1, 1, 1]} : vector<2x8x14xf32> to vector<2x8x12xf32>
    "tpu.trace_start"() <{level = 10 : i32, message = "noc,ncl->nol"}> : () -> ()
    %cst_29 = arith.constant dense<0.000000e+00> : vector<2x8x12xf32>
    %87 = tpu.matmul %85, %86, %cst_29 {dimension_numbers = #tpu.dot_dimension_numbers<[2], [1], [1], [2], [0, 0, 0, 1, 1, 2], [0], [0]>} : vector<2x8x8xf32>, vector<2x8x12xf32>, vector<2x8x12xf32> -> vector<2x8x12xf32>
    "tpu.trace_stop"() : () -> ()
    %88 = arith.addf %80, %87 : vector<2x8x12xf32>
    %c1_30 = arith.constant 1 : index
    %c0_31 = arith.constant 0 : index
    %c0_32 = arith.constant 0 : index
    %89 = vector.load %arg3[%c1_30, %c0_31, %c0_32] : memref<3x8x8xf32, #tpu.memory_space<vmem>>, vector<1x8x8xf32>
    %90 = vector.shape_cast %89 : vector<1x8x8xf32> to vector<8x8xf32>
    %91 = vector.shape_cast %90 : vector<8x8xf32> to vector<1x8x8xf32>
    %92 = vector.shape_cast %91 : vector<1x8x8xf32> to vector<1x8x8xf32>
    %93 = vector.broadcast %92 : vector<1x8x8xf32> to vector<2x8x8xf32>
    %94 = vector.extract_strided_slice %77 {offsets = [0, 0, 1], sizes = [2, 8, 12], strides = [1, 1, 1]} : vector<2x8x14xf32> to vector<2x8x12xf32>
    "tpu.trace_start"() <{level = 10 : i32, message = "noc,ncl->nol"}> : () -> ()
    %cst_33 = arith.constant dense<0.000000e+00> : vector<2x8x12xf32>
    %95 = tpu.matmul %93, %94, %cst_33 {dimension_numbers = #tpu.dot_dimension_numbers<[2], [1], [1], [2], [0, 0, 0, 1, 1, 2], [0], [0]>} : vector<2x8x8xf32>, vector<2x8x12xf32>, vector<2x8x12xf32> -> vector<2x8x12xf32>
    "tpu.trace_stop"() : () -> ()
    %96 = arith.addf %88, %95 : vector<2x8x12xf32>
    %c2_34 = arith.constant 2 : index
    %c0_35 = arith.constant 0 : index
    %c0_36 = arith.constant 0 : index
    %97 = vector.load %arg3[%c2_34, %c0_35, %c0_36] : memref<3x8x8xf32, #tpu.memory_space<vmem>>, vector<1x8x8xf32>
    %98 = vector.shape_cast %97 : vector<1x8x8xf32> to vector<8x8xf32>
    %99 = vector.shape_cast %98 : vector<8x8xf32> to vector<1x8x8xf32>
    %100 = vector.shape_cast %99 : vector<1x8x8xf32> to vector<1x8x8xf32>
    %101 = vector.broadcast %100 : vector<1x8x8xf32> to vector<2x8x8xf32>
    %102 = vector.extract_strided_slice %77 {offsets = [0, 0, 2], sizes = [2, 8, 12], strides = [1, 1, 1]} : vector<2x8x14xf32> to vector<2x8x12xf32>
    "tpu.trace_start"() <{level = 10 : i32, message = "noc,ncl->nol"}> : () -> ()
    %cst_37 = arith.constant dense<0.000000e+00> : vector<2x8x12xf32>
    %103 = tpu.matmul %101, %102, %cst_37 {dimension_numbers = #tpu.dot_dimension_numbers<[2], [1], [1], [2], [0, 0, 0, 1, 1, 2], [0], [0]>} : vector<2x8x8xf32>, vector<2x8x12xf32>, vector<2x8x12xf32> -> vector<2x8x12xf32>
    "tpu.trace_stop"() : () -> ()
    %104 = arith.addf %96, %103 : vector<2x8x12xf32>
    %cst_38 = arith.constant 0.000000e+00 : f32
    %105 = vector.broadcast %cst_38 : f32 to vector<2x8x12xf32>
    %106 = arith.cmpf ogt, %104, %105 : vector<2x8x12xf32>
    %107 = vector.broadcast %13 : vector<1x8x1xf32> to vector<2x8x12xf32>
    %108 = arith.mulf %107, %104 : vector<2x8x12xf32>
    %109 = arith.select %106, %104, %108 : vector<2x8x12xi1>, vector<2x8x12xf32>
    %cst_39 = arith.constant dense<0.000000e+00> : vector<2x8xf32>
    %110 = vector.multi_reduction <add>, %109, %cst_39 [2] : vector<2x8x12xf32> to vector<2x8xf32>
    %111 = vector.shape_cast %110 : vector<2x8xf32> to vector<2x8x1xf32>
    %cst_40 = arith.constant dense<0.000000e+00> : vector<8x1xf32>
    %112 = vector.multi_reduction <add>, %111, %cst_40 [0] : vector<2x8x1xf32> to vector<8x1xf32>
    %113 = vector.shape_cast %112 : vector<8x1xf32> to vector<1x8x1xf32>
    %cst_41 = arith.constant 0.0416666679 : f32
    %114 = vector.broadcast %cst_41 : f32 to vector<1x8x1xf32>
    %115 = arith.mulf %113, %114 : vector<1x8x1xf32>
    %116 = vector.broadcast %115 : vector<1x8x1xf32> to vector<2x8x12xf32>
    %117 = arith.subf %109, %116 : vector<2x8x12xf32>
    %118 = arith.mulf %117, %117 : vector<2x8x12xf32>
    %cst_42 = arith.constant dense<0.000000e+00> : vector<2x8xf32>
    %119 = vector.multi_reduction <add>, %118, %cst_42 [2] : vector<2x8x12xf32> to vector<2x8xf32>
    %120 = vector.shape_cast %119 : vector<2x8xf32> to vector<2x8x1xf32>
    %cst_43 = arith.constant dense<0.000000e+00> : vector<8x1xf32>
    %121 = vector.multi_reduction <add>, %120, %cst_43 [0] : vector<2x8x1xf32> to vector<8x1xf32>
    %122 = vector.shape_cast %121 : vector<8x1xf32> to vector<1x8x1xf32>
    %cst_44 = arith.constant 0.0416666679 : f32
    %123 = vector.broadcast %cst_44 : f32 to vector<1x8x1xf32>
    %124 = arith.mulf %122, %123 : vector<1x8x1xf32>
    %cst_45 = arith.constant 9.99999974E-6 : f32
    %125 = vector.broadcast %cst_45 : f32 to vector<1x8x1xf32>
    %126 = arith.addf %124, %125 : vector<1x8x1xf32>
    %127 = math.rsqrt %126 : vector<1x8x1xf32>
    %128 = arith.mulf %127, %15 : vector<1x8x1xf32>
    %129 = vector.broadcast %128 : vector<1x8x1xf32> to vector<2x8x12xf32>
    %130 = arith.mulf %117, %129 : vector<2x8x12xf32>
    %131 = vector.broadcast %17 : vector<1x8x1xf32> to vector<2x8x12xf32>
    %132 = arith.addf %130, %131 : vector<2x8x12xf32>
    %c0_46 = arith.constant 0 : index
    %c0_47 = arith.constant 0 : index
    %c0_48 = arith.constant 0 : index
    %133 = vector.load %arg5[%c0_46, %c0_47, %c0_48] : memref<2x8x12xf32, #tpu.memory_space<vmem>>, vector<2x8x12xf32>
    tpu.vector_store %arg5[%c0_46, %c0_47, %c0_48], %132 {strides = array<i32>} : memref<2x8x12xf32, #tpu.memory_space<vmem>>, vector<2x8x12xf32>,
    return
  }
}

</mosaic_0001>

<llo_original>
// kernel: tpu_custom_call.1
$region0: #{tpu_custom_call.1}
  #allocation0 [shape = 'u32[]', space=smem, size = 0x4, offset = 0x4, fixed_abs, tag = 'smem constant byte address 0x4 - core index']
  #allocation1 [shape = 'u32[144,128]{1,0:T(1,128)}', space=vmem, size = 0x12000, scoped, tag = 'internal scratch']
  %s0 = inlined_call_operand.hbm [shape: f32[2,4,32], index: 0, kind: input, shape index: {}]
  %s1 = inlined_call_operand.vmem [shape: f32[32,42], index: 1, kind: input, shape index: {}]
  %s2 = inlined_call_operand.vmem [shape: f32[3,8,4], index: 2, kind: input, shape index: {}]
  %s3 = inlined_call_operand.hbm [shape: f32[3,8,8], index: 3, kind: input, shape index: {}]
  %s4 = inlined_call_operand.vmem [shape: f32[8,8], index: 4, kind: input, shape index: {}]
  %s5 = inlined_call_operand.hbm [shape: f32[2,8,12], index: 5, kind: output, shape index: {}]
  %s6 = sld [smem:[#allocation0]]
  $region38: #{tpu_custom_call.1} parent=0
    _
  %s8 = ssub.s32 1, %s6
  %s9 = scalar_select 0, %s8, %s6
  $region1: #{tpu_custom_call.1} parent=0
    #allocation2 [shape = 'u8[4096]{0}', space=vmem, size = 0x1000, scoped, tag = 'input window, operand 0, single buffered']
    #allocation3 [shape = 's32[1]{0}', space=sflag, size = 0x4, scoped, tag = 'scoped memory for tpu_custom_call.1']
    #allocation4 [shape = 's32[1]{0}', space=sflag, size = 0x4, scoped, tag = 'scoped memory for tpu_custom_call.1']
    #allocation5 [shape = 'u8[12288]{0}', space=vmem, size = 0x3000, scoped, tag = 'input window, operand 3, single buffered']
    #allocation6 [shape = 's32[1]{0}', space=sflag, size = 0x4, scoped, tag = 'scoped memory for tpu_custom_call.1']
    #allocation7 [shape = 'u8[8192]{0}', space=vmem, size = 0x2000, scoped, tag = 'output window, operand 0, single buffered']
    %10 = vsyncpa [#allocation3], 0
    %11 = vsyncpa [#allocation6], 0
    %12 = vsyncpa [#allocation4], 0
    // Predicated region
    $region2: #{tpu_custom_call.1} parent=1 // pred_check
      _
    $region3: #{tpu_custom_call.1} parent=1 // pred_check_branch
      %14 = sbr.rel (0) target = $region5
    $region4: #{tpu_custom_call.1} parent=1 // pred_region
      %s16 = ssub.s32 128, 128
      %17 = vsyncadd [#allocation3], %s16
      %s18 = sshll.u32 [#allocation2], 4
      %s19 = int_to_ptr.vmem [resolvable:$true] %s18
      %24 = dma.hbm_to_vmem [thread:$0]  %s0, 128, %s19, [#allocation3], 64, 64, 4
    $region5: #{tpu_custom_call.1} parent=1 // pred_fallthru
      _
    // Predicated region
    $region6: #{tpu_custom_call.1} parent=1 // pred_check
      _
    $region7: #{tpu_custom_call.1} parent=1 // pred_check_branch
      %26 = sbr.rel (0) target = $region9
    $region8: #{tpu_custom_call.1} parent=1 // pred_region
      _
    $region9: #{tpu_custom_call.1} parent=1 // pred_fallthru
      _
    // Predicated region
    $region10: #{tpu_custom_call.1} parent=1 // pred_check
      _
    $region11: #{tpu_custom_call.1} parent=1 // pred_check_branch
      %28 = sbr.rel (0) target = $region13
    $region12: #{tpu_custom_call.1} parent=1 // pred_region
      _
    $region13: #{tpu_custom_call.1} parent=1 // pred_fallthru
      _
    // Predicated region
    $region14: #{tpu_custom_call.1} parent=1 // pred_check
      _
    $region15: #{tpu_custom_call.1} parent=1 // pred_check_branch
      %30 = sbr.rel (0) target = $region17
    $region16: #{tpu_custom_call.1} parent=1 // pred_region
      %s32 = ssub.s32 384, 384
      %33 = vsyncadd [#allocation6], %s32
      %s34 = sshll.u32 [#allocation5], 4
      %s35 = int_to_ptr.vmem [resolvable:$true] %s34
      %40 = dma.hbm_to_vmem [thread:$0]  %s3, 384, %s35, [#allocation6], 128, 128, 8
    $region17: #{tpu_custom_call.1} parent=1 // pred_fallthru
      _
    // Predicated region
    $region18: #{tpu_custom_call.1} parent=1 // pred_check
      _
    $region19: #{tpu_custom_call.1} parent=1 // pred_check_branch
      %42 = sbr.rel (0) target = $region21
    $region20: #{tpu_custom_call.1} parent=1 // pred_region
      _
    $region21: #{tpu_custom_call.1} parent=1 // pred_fallthru
      _
    // Predicated region
    $region22: #{tpu_custom_call.1} parent=1 // pred_check
      _
    $region23: #{tpu_custom_call.1} parent=1 // pred_check_branch
      %44 = sbr.rel (0) target = $region25
    $region24: #{tpu_custom_call.1} parent=1 // pred_region
      %45 = dma.done [#allocation3], 128
    $region25: #{tpu_custom_call.1} parent=1 // pred_fallthru
      _
    // Predicated region
    $region26: #{tpu_custom_call.1} parent=1 // pred_check
      _
    $region27: #{tpu_custom_call.1} parent=1 // pred_check_branch
      %47 = sbr.rel (0) target = $region29
    $region28: #{tpu_custom_call.1} parent=1 // pred_region
      %48 = dma.done [#allocation6], 384
    $region29: #{tpu_custom_call.1} parent=1 // pred_fallthru
      _
    %v49 = vld [vmem:[#allocation2] sm:$0xf]
    %v50 = vld [vmem:[#allocation2 + $0x4] sm:$0xf]
    %v51 = vld [vmem:[%s4] sm:$0xff]
    %v52 = vld [vmem:[%s1] sm:$0xff]
    %v53 = vld [vmem:[%s1 + $0x8] sm:$0xff]
    %v54 = vld [vmem:[%s1 + $0x10] sm:$0xff]
    %v55 = vld [vmem:[%s1 + $0x18] sm:$0xff]
    %vm56 = vcmask 261120
    %v58 = vsel %vm56, %v49, 0
    %60 = vmatprep.subr.mxu0 0.0
    %61 = vmatpush1.msra.mxu0 %v52
    %62 = vmatprep.subr.mxu0 0.0
    %63 = vmatpush1.msra.mxu0 %v53
    %64 = vmatprep.subr.mxu0 0.0
    %65 = vmatpush1.msra.mxu0 %v54
    %66 = vmatprep.subr.mxu0 0.0
    %67 = vmatpush1.msra.mxu0 %v55
    %68 = vmatprep.subr.mxu0 0.0
    %69 = vmatpush1.msra.mxu0 0.0
    %70 = vmatprep.subr.mxu0 0.0
    %71 = vmatpush1.msra.mxu0 0.0
    %72 = vmatprep.subr.mxu0 0.0
    %73 = vmatpush1.msra.mxu0 0.0
    %74 = vmatprep.subr.mxu0 0.0
    %75 = vmatpush1.msra.mxu0 0.0
    %76 = vmatprep.subr.mxu0 0.0
    %77 = vmatpush1.msra.mxu0 0.0
    %78 = vmatprep.subr.mxu0 0.0
    %79 = vmatpush1.msra.mxu0 0.0
    %80 = vmatprep.subr.mxu0 0.0
    %81 = vmatpush1.msra.mxu0 0.0
    %82 = vmatprep.subr.mxu0 0.0
    %83 = vmatpush1.msra.mxu0 0.0
    %84 = vmatprep.subr.mxu0 0.0
    %85 = vmatpush1.msra.mxu0 0.0
    %86 = vmatprep.subr.mxu0 0.0
    %87 = vmatpush1.msra.mxu0 0.0
    %88 = vmatprep.subr.mxu0 0.0
    %89 = vmatpush1.msra.mxu0 0.0
    %90 = vmatprep.subr.mxu0 0.0
    %91 = vmatpush1.msra.mxu0 0.0
    %92 = vmatprep.subr.mxu0 0.0
    %93 = vmatpush1.msra.mxu0 0.0
    %94 = vmatprep.subr.mxu0 0.0
    %95 = vmatpush1.msra.mxu0 0.0
    %96 = vmatprep.subr.mxu0 0.0
    %97 = vmatpush1.msra.mxu0 0.0
    %98 = vmatprep.subr.mxu0 0.0
    %99 = vmatpush1.msra.mxu0 0.0
    %100 = vmatprep.subr.mxu0 0.0
    %101 = vmatpush1.msra.mxu0 0.0
    %102 = vmatprep.subr.mxu0 0.0
    %103 = vmatpush1.msra.mxu0 0.0
    %104 = vmatprep.subr.mxu0 0.0
    %105 = vmatpush1.msra.mxu0 0.0
    %106 = vmatprep.subr.mxu0 0.0
    %107 = vmatpush1.msra.mxu0 0.0
    %108 = vmatprep.subr.mxu0 0.0
    %109 = vmatpush1.msra.mxu0 0.0
    %110 = vmatprep.subr.mxu0 0.0
    %111 = vmatpush1.msra.mxu0 0.0
    %112 = vmatprep.subr.mxu0 0.0
    %113 = vmatpush1.msra.mxu0 0.0
    %114 = vmatprep.subr.mxu0 0.0
    %115 = vmatpush1.msra.mxu0 0.0
    %116 = vmatprep.subr.mxu0 0.0
    %117 = vmatpush1.msra.mxu0 0.0
    %118 = vmatprep.subr.mxu0 0.0
    %119 = vmatpush1.msra.mxu0 0.0
    %120 = vmatprep.subr.mxu0 0.0
    %121 = vmatpush1.msra.mxu0 0.0
    %122 = vmatprep.subr.mxu0 0.0
    %123 = vmatpush1.msra.mxu0 0.0
    %124 = vmatprep.mubr.f32.mxu0 0.0
    %125 = vmatmul.mubr.f32.gmra.mrb[0].mxu0 %v58
    %v126 = vpop.f32.mrb[0].mxu0
    %v127 = vadd.f32 0.0, %v126
    %v128 = vpop.f32.mrb[0].mxu0
    %129 = vdwg.mxu0
    %v131 = vsel %vm56, %v50, 0
    %133 = vmatprep.subr.mxu0 0.0
    %134 = vmatpush1.msra.mxu0 %v52
    %135 = vmatprep.subr.mxu0 0.0
    %136 = vmatpush1.msra.mxu0 %v53
    %137 = vmatprep.subr.mxu0 0.0
    %138 = vmatpush1.msra.mxu0 %v54
    %139 = vmatprep.subr.mxu0 0.0
    %140 = vmatpush1.msra.mxu0 %v55
    %141 = vmatprep.subr.mxu0 0.0
    %142 = vmatpush1.msra.mxu0 0.0
    %143 = vmatprep.subr.mxu0 0.0
    %144 = vmatpush1.msra.mxu0 0.0
    %145 = vmatprep.subr.mxu0 0.0
    %146 = vmatpush1.msra.mxu0 0.0
    %147 = vmatprep.subr.mxu0 0.0
    %148 = vmatpush1.msra.mxu0 0.0
    %149 = vmatprep.subr.mxu0 0.0
    %150 = vmatpush1.msra.mxu0 0.0
    %151 = vmatprep.subr.mxu0 0.0
    %152 = vmatpush1.msra.mxu0 0.0
    %153 = vmatprep.subr.mxu0 0.0
    %154 = vmatpush1.msra.mxu0 0.0
    %155 = vmatprep.subr.mxu0 0.0
    %156 = vmatpush1.msra.mxu0 0.0
    %157 = vmatprep.subr.mxu0 0.0
    %158 = vmatpush1.msra.mxu0 0.0
    %159 = vmatprep.subr.mxu0 0.0
    %160 = vmatpush1.msra.mxu0 0.0
    %161 = vmatprep.subr.mxu0 0.0
    %162 = vmatpush1.msra.mxu0 0.0
    %163 = vmatprep.subr.mxu0 0.0
    %164 = vmatpush1.msra.mxu0 0.0
    %165 = vmatprep.subr.mxu0 0.0
    %166 = vmatpush1.msra.mxu0 0.0
    %167 = vmatprep.subr.mxu0 0.0
    %168 = vmatpush1.msra.mxu0 0.0
    %169 = vmatprep.subr.mxu0 0.0
    %170 = vmatpush1.msra.mxu0 0.0
    %171 = vmatprep.subr.mxu0 0.0
    %172 = vmatpush1.msra.mxu0 0.0
    %173 = vmatprep.subr.mxu0 0.0
    %174 = vmatpush1.msra.mxu0 0.0
    %175 = vmatprep.subr.mxu0 0.0
    %176 = vmatpush1.msra.mxu0 0.0
    %177 = vmatprep.subr.mxu0 0.0
    %178 = vmatpush1.msra.mxu0 0.0
    %179 = vmatprep.subr.mxu0 0.0
    %180 = vmatpush1.msra.mxu0 0.0
    %181 = vmatprep.subr.mxu0 0.0
    %182 = vmatpush1.msra.mxu0 0.0
    %183 = vmatprep.subr.mxu0 0.0
    %184 = vmatpush1.msra.mxu0 0.0
    %185 = vmatprep.subr.mxu0 0.0
    %186 = vmatpush1.msra.mxu0 0.0
    %187 = vmatprep.subr.mxu0 0.0
    %188 = vmatpush1.msra.mxu0 0.0
    %189 = vmatprep.subr.mxu0 0.0
    %190 = vmatpush1.msra.mxu0 0.0
    %191 = vmatprep.subr.mxu0 0.0
    %192 = vmatpush1.msra.mxu0 0.0
    %193 = vmatprep.subr.mxu0 0.0
    %194 = vmatpush1.msra.mxu0 0.0
    %195 = vmatprep.subr.mxu0 0.0
    %196 = vmatpush1.msra.mxu0 0.0
    %197 = vmatprep.mubr.f32.mxu0 0.0
    %198 = vmatmul.mubr.f32.gmra.mrb[0].mxu0 %v131
    %v199 = vpop.f32.mrb[0].mxu0
    %v200 = vadd.f32 0.0, %v199
    %v201 = vpop.f32.mrb[0].mxu0
    %202 = vdwg.mxu0
    %204 = vset.pattern.permute.xlu0 0
    %205 = vperm.xlu0 %204, %v51
    %v206 = vpop.permute.xlu0 %205
    %v208 = vadd.f32 %v206, 0.0
    %v209 = vld [vmem:[%s2] sm:$0xff]
    %vm210 = vcmask 31744
    %v212 = vsel %vm210, %v209, 0
    %vm214 = vcmask 1043456
    %v216 = vsel %vm214, %v127, 0
    %218 = vmatprep.subr.mxu0 0.0
    %219 = vmatpush1.msra.mxu0 %v216
    %220 = vmatprep.subr.mxu0 0.0
    %221 = vmatpush1.msra.mxu0 0.0
    %222 = vmatprep.subr.mxu0 0.0
    %223 = vmatpush1.msra.mxu0 0.0
    %224 = vmatprep.subr.mxu0 0.0
    %225 = vmatpush1.msra.mxu0 0.0
    %226 = vmatprep.subr.mxu0 0.0
    %227 = vmatpush1.msra.mxu0 0.0
    %228 = vmatprep.subr.mxu0 0.0
    %229 = vmatpush1.msra.mxu0 0.0
    %230 = vmatprep.subr.mxu0 0.0
    %231 = vmatpush1.msra.mxu0 0.0
    %232 = vmatprep.subr.mxu0 0.0
    %233 = vmatpush1.msra.mxu0 0.0
    %234 = vmatprep.subr.mxu0 0.0
    %235 = vmatpush1.msra.mxu0 0.0
    %236 = vmatprep.subr.mxu0 0.0
    %237 = vmatpush1.msra.mxu0 0.0
    %238 = vmatprep.subr.mxu0 0.0
    %239 = vmatpush1.msra.mxu0 0.0
    %240 = vmatprep.subr.mxu0 0.0
    %241 = vmatpush1.msra.mxu0 0.0
    %242 = vmatprep.subr.mxu0 0.0
    %243 = vmatpush1.msra.mxu0 0.0
    %244 = vmatprep.subr.mxu0 0.0
    %245 = vmatpush1.msra.mxu0 0.0
    %246 = vmatprep.subr.mxu0 0.0
    %247 = vmatpush1.msra.mxu0 0.0
    %248 = vmatprep.subr.mxu0 0.0
    %249 = vmatpush1.msra.mxu0 0.0
    %250 = vmatprep.subr.mxu0 0.0
    %251 = vmatpush1.msra.mxu0 0.0
    %252 = vmatprep.subr.mxu0 0.0
    %253 = vmatpush1.msra.mxu0 0.0
    %254 = vmatprep.subr.mxu0 0.0
    %255 = vmatpush1.msra.mxu0 0.0
    %256 = vmatprep.subr.mxu0 0.0
    %257 = vmatpush1.msra.mxu0 0.0
    %258 = vmatprep.subr.mxu0 0.0
    %259 = vmatpush1.msra.mxu0 0.0
    %260 = vmatprep.subr.mxu0 0.0
    %261 = vmatpush1.msra.mxu0 0.0
    %262 = vmatprep.subr.mxu0 0.0
    %263 = vmatpush1.msra.mxu0 0.0
    %264 = vmatprep.subr.mxu0 0.0
    %265 = vmatpush1.msra.mxu0 0.0
    %266 = vmatprep.subr.mxu0 0.0
    %267 = vmatpush1.msra.mxu0 0.0
    %268 = vmatprep.subr.mxu0 0.0
    %269 = vmatpush1.msra.mxu0 0.0
    %270 = vmatprep.subr.mxu0 0.0
    %271 = vmatpush1.msra.mxu0 0.0
    %272 = vmatprep.subr.mxu0 0.0
    %273 = vmatpush1.msra.mxu0 0.0
    %274 = vmatprep.subr.mxu0 0.0
    %275 = vmatpush1.msra.mxu0 0.0
    %276 = vmatprep.subr.mxu0 0.0
    %277 = vmatpush1.msra.mxu0 0.0
    %278 = vmatprep.subr.mxu0 0.0
    %279 = vmatpush1.msra.mxu0 0.0
    %280 = vmatprep.subr.mxu0 0.0
    %281 = vmatpush1.msra.mxu0 0.0
    %282 = vmatprep.mubr.f32.mxu0 0.0
    %283 = vmatmul.mubr.f32.gmra.mrb[0].mxu0 %v212
    %v284 = vpop.f32.mrb[0].mxu0
    %v285 = vadd.f32 0.0, %v284
    %v286 = vpop.f32.mrb[0].mxu0
    %287 = vdwg.mxu0
    %v289 = vsel %vm214, %v200, 0
    %291 = vmatprep.subr.mxu0 0.0
    %292 = vmatpush1.msra.mxu0 %v289
    %293 = vmatprep.subr.mxu0 0.0
    %294 = vmatpush1.msra.mxu0 0.0
    %295 = vmatprep.subr.mxu0 0.0
    %296 = vmatpush1.msra.mxu0 0.0
    %297 = vmatprep.subr.mxu0 0.0
    %298 = vmatpush1.msra.mxu0 0.0
    %299 = vmatprep.subr.mxu0 0.0
    %300 = vmatpush1.msra.mxu0 0.0
    %301 = vmatprep.subr.mxu0 0.0
    %302 = vmatpush1.msra.mxu0 0.0
    %303 = vmatprep.subr.mxu0 0.0
    %304 = vmatpush1.msra.mxu0 0.0
    %305 = vmatprep.subr.mxu0 0.0
    %306 = vmatpush1.msra.mxu0 0.0
    %307 = vmatprep.subr.mxu0 0.0
    %308 = vmatpush1.msra.mxu0 0.0
    %309 = vmatprep.subr.mxu0 0.0
    %310 = vmatpush1.msra.mxu0 0.0
    %311 = vmatprep.subr.mxu0 0.0
    %312 = vmatpush1.msra.mxu0 0.0
    %313 = vmatprep.subr.mxu0 0.0
    %314 = vmatpush1.msra.mxu0 0.0
    %315 = vmatprep.subr.mxu0 0.0
    %316 = vmatpush1.msra.mxu0 0.0
    %317 = vmatprep.subr.mxu0 0.0
    %318 = vmatpush1.msra.mxu0 0.0
    %319 = vmatprep.subr.mxu0 0.0
    %320 = vmatpush1.msra.mxu0 0.0
    %321 = vmatprep.subr.mxu0 0.0
    %322 = vmatpush1.msra.mxu0 0.0
    %323 = vmatprep.subr.mxu0 0.0
    %324 = vmatpush1.msra.mxu0 0.0
    %325 = vmatprep.subr.mxu0 0.0
    %326 = vmatpush1.msra.mxu0 0.0
    %327 = vmatprep.subr.mxu0 0.0
    %328 = vmatpush1.msra.mxu0 0.0
    %329 = vmatprep.subr.mxu0 0.0
    %330 = vmatpush1.msra.mxu0 0.0
    %331 = vmatprep.subr.mxu0 0.0
    %332 = vmatpush1.msra.mxu0 0.0
    %333 = vmatprep.subr.mxu0 0.0
    %334 = vmatpush1.msra.mxu0 0.0
    %335 = vmatprep.subr.mxu0 0.0
    %336 = vmatpush1.msra.mxu0 0.0
    %337 = vmatprep.subr.mxu0 0.0
    %338 = vmatpush1.msra.mxu0 0.0
    %339 = vmatprep.subr.mxu0 0.0
    %340 = vmatpush1.msra.mxu0 0.0
    %341 = vmatprep.subr.mxu0 0.0
    %342 = vmatpush1.msra.mxu0 0.0
    %343 = vmatprep.subr.mxu0 0.0
    %344 = vmatpush1.msra.mxu0 0.0
    %345 = vmatprep.subr.mxu0 0.0
    %346 = vmatpush1.msra.mxu0 0.0
    %347 = vmatprep.subr.mxu0 0.0
    %348 = vmatpush1.msra.mxu0 0.0
    %349 = vmatprep.subr.mxu0 0.0
    %350 = vmatpush1.msra.mxu0 0.0
    %351 = vmatprep.subr.mxu0 0.0
    %352 = vmatpush1.msra.mxu0 0.0
    %353 = vmatprep.subr.mxu0 0.0
    %354 = vmatpush1.msra.mxu0 0.0
    %355 = vmatprep.mubr.f32.mxu0 0.0
    %356 = vmatmul.mubr.f32.gmra.mrb[0].mxu0 %v212
    %v357 = vpop.f32.mrb[0].mxu0
    %v358 = vadd.f32 0.0, %v357
    %v359 = vpop.f32.mrb[0].mxu0
    %360 = vdwg.mxu0
    %v361 = vadd.f32 %v208, %v285
    %v362 = vadd.f32 %v208, %v358
    %s363 = scalar_lea.vmem %s2, 8
    %v364 = vld [vmem:[%s363] sm:$0xff]
    %365 = vrot.lane.b32.xlu0 %v127, 114
    %v366 = vpop.permute.xlu0 %365
    %v368 = vsel %vm210, %v364, 0
    %v370 = vsel %vm214, %v366, 0
    %372 = vmatprep.subr.mxu0 0.0
    %373 = vmatpush1.msra.mxu0 %v370
    %374 = vmatprep.subr.mxu0 0.0
    %375 = vmatpush1.msra.mxu0 0.0
    %376 = vmatprep.subr.mxu0 0.0
    %377 = vmatpush1.msra.mxu0 0.0
    %378 = vmatprep.subr.mxu0 0.0
    %379 = vmatpush1.msra.mxu0 0.0
    %380 = vmatprep.subr.mxu0 0.0
    %381 = vmatpush1.msra.mxu0 0.0
    %382 = vmatprep.subr.mxu0 0.0
    %383 = vmatpush1.msra.mxu0 0.0
    %384 = vmatprep.subr.mxu0 0.0
    %385 = vmatpush1.msra.mxu0 0.0
    %386 = vmatprep.subr.mxu0 0.0
    %387 = vmatpush1.msra.mxu0 0.0
    %388 = vmatprep.subr.mxu0 0.0
    %389 = vmatpush1.msra.mxu0 0.0
    %390 = vmatprep.subr.mxu0 0.0
    %391 = vmatpush1.msra.mxu0 0.0
    %392 = vmatprep.subr.mxu0 0.0
    %393 = vmatpush1.msra.mxu0 0.0
    %394 = vmatprep.subr.mxu0 0.0
    %395 = vmatpush1.msra.mxu0 0.0
    %396 = vmatprep.subr.mxu0 0.0
    %397 = vmatpush1.msra.mxu0 0.0
    %398 = vmatprep.subr.mxu0 0.0
    %399 = vmatpush1.msra.mxu0 0.0
    %400 = vmatprep.subr.mxu0 0.0
    %401 = vmatpush1.msra.mxu0 0.0
    %402 = vmatprep.subr.mxu0 0.0
    %403 = vmatpush1.msra.mxu0 0.0
    %404 = vmatprep.subr.mxu0 0.0
    %405 = vmatpush1.msra.mxu0 0.0
    %406 = vmatprep.subr.mxu0 0.0
    %407 = vmatpush1.msra.mxu0 0.0
    %408 = vmatprep.subr.mxu0 0.0
    %409 = vmatpush1.msra.mxu0 0.0
    %410 = vmatprep.subr.mxu0 0.0
    %411 = vmatpush1.msra.mxu0 0.0
    %412 = vmatprep.subr.mxu0 0.0
    %413 = vmatpush1.msra.mxu0 0.0
    %414 = vmatprep.subr.mxu0 0.0
    %415 = vmatpush1.msra.mxu0 0.0
    %416 = vmatprep.subr.mxu0 0.0
    %417 = vmatpush1.msra.mxu0 0.0
    %418 = vmatprep.subr.mxu0 0.0
    %419 = vmatpush1.msra.mxu0 0.0
    %420 = vmatprep.subr.mxu0 0.0
    %421 = vmatpush1.msra.mxu0 0.0
    %422 = vmatprep.subr.mxu0 0.0
    %423 = vmatpush1.msra.mxu0 0.0
    %424 = vmatprep.subr.mxu0 0.0
    %425 = vmatpush1.msra.mxu0 0.0
    %426 = vmatprep.subr.mxu0 0.0
    %427 = vmatpush1.msra.mxu0 0.0
    %428 = vmatprep.subr.mxu0 0.0
    %429 = vmatpush1.msra.mxu0 0.0
    %430 = vmatprep.subr.mxu0 0.0
    %431 = vmatpush1.msra.mxu0 0.0
    %432 = vmatprep.subr.mxu0 0.0
    %433 = vmatpush1.msra.mxu0 0.0
    %434 = vmatprep.subr.mxu0 0.0
    %435 = vmatpush1.msra.mxu0 0.0
    %436 = vmatprep.mubr.f32.mxu0 0.0
    %437 = vmatmul.mubr.f32.gmra.mrb[0].mxu0 %v368
    %v438 = vpop.f32.mrb[0].mxu0
    %v439 = vadd.f32 0.0, %v438
    %v440 = vpop.f32.mrb[0].mxu0
    %441 = vdwg.mxu0
    %442 = vrot.lane.b32.xlu0 %v200, 114
    %v443 = vpop.permute.xlu0 %442
    %v444 = vsel %vm214, %v443, 0
    %446 = vmatprep.subr.mxu0 0.0
    %447 = vmatpush1.msra.mxu0 %v444
    %448 = vmatprep.subr.mxu0 0.0
    %449 = vmatpush1.msra.mxu0 0.0
    %450 = vmatprep.subr.mxu0 0.0
    %451 = vmatpush1.msra.mxu0 0.0
    %452 = vmatprep.subr.mxu0 0.0
    %453 = vmatpush1.msra.mxu0 0.0
    %454 = vmatprep.subr.mxu0 0.0
    %455 = vmatpush1.msra.mxu0 0.0
    %456 = vmatprep.subr.mxu0 0.0
    %457 = vmatpush1.msra.mxu0 0.0
    %458 = vmatprep.subr.mxu0 0.0
    %459 = vmatpush1.msra.mxu0 0.0
    %460 = vmatprep.subr.mxu0 0.0
    %461 = vmatpush1.msra.mxu0 0.0
    %462 = vmatprep.subr.mxu0 0.0
    %463 = vmatpush1.msra.mxu0 0.0
    %464 = vmatprep.subr.mxu0 0.0
    %465 = vmatpush1.msra.mxu0 0.0
    %466 = vmatprep.subr.mxu0 0.0
    %467 = vmatpush1.msra.mxu0 0.0
    %468 = vmatprep.subr.mxu0 0.0
    %469 = vmatpush1.msra.mxu0 0.0
    %470 = vmatprep.subr.mxu0 0.0
    %471 = vmatpush1.msra.mxu0 0.0
    %472 = vmatprep.subr.mxu0 0.0
    %473 = vmatpush1.msra.mxu0 0.0
    %474 = vmatprep.subr.mxu0 0.0
    %475 = vmatpush1.msra.mxu0 0.0
    %476 = vmatprep.subr.mxu0 0.0
    %477 = vmatpush1.msra.mxu0 0.0
    %478 = vmatprep.subr.mxu0 0.0
    %479 = vmatpush1.msra.mxu0 0.0
    %480 = vmatprep.subr.mxu0 0.0
    %481 = vmatpush1.msra.mxu0 0.0
    %482 = vmatprep.subr.mxu0 0.0
    %483 = vmatpush1.msra.mxu0 0.0
    %484 = vmatprep.subr.mxu0 0.0
    %485 = vmatpush1.msra.mxu0 0.0
    %486 = vmatprep.subr.mxu0 0.0
    %487 = vmatpush1.msra.mxu0 0.0
    %488 = vmatprep.subr.mxu0 0.0
    %489 = vmatpush1.msra.mxu0 0.0
    %490 = vmatprep.subr.mxu0 0.0
    %491 = vmatpush1.msra.mxu0 0.0
    %492 = vmatprep.subr.mxu0 0.0
    %493 = vmatpush1.msra.mxu0 0.0
    %494 = vmatprep.subr.mxu0 0.0
    %495 = vmatpush1.msra.mxu0 0.0
    %496 = vmatprep.subr.mxu0 0.0
    %497 = vmatpush1.msra.mxu0 0.0
    %498 = vmatprep.subr.mxu0 0.0
    %499 = vmatpush1.msra.mxu0 0.0
    %500 = vmatprep.subr.mxu0 0.0
    %501 = vmatpush1.msra.mxu0 0.0
    %502 = vmatprep.subr.mxu0 0.0
    %503 = vmatpush1.msra.mxu0 0.0
    %504 = vmatprep.subr.mxu0 0.0
    %505 = vmatpush1.msra.mxu0 0.0
    %506 = vmatprep.subr.mxu0 0.0
    %507 = vmatpush1.msra.mxu0 0.0
    %508 = vmatprep.subr.mxu0 0.0
    %509 = vmatpush1.msra.mxu0 0.0
    %510 = vmatprep.mubr.f32.mxu0 0.0
    %511 = vmatmul.mubr.f32.gmra.mrb[0].mxu0 %v368
    %v512 = vpop.f32.mrb[0].mxu0
    %v513 = vadd.f32 0.0, %v512
    %v514 = vpop.f32.mrb[0].mxu0
    %515 = vdwg.mxu0
    %v516 = vadd.f32 %v361, %v439
    %v517 = vadd.f32 %v362, %v513
    %s518 = scalar_lea.vmem %s2, 16
    %v519 = vld [vmem:[%s518] sm:$0xff]
    %520 = vrot.lane.b32.xlu0 %v127, 100
    %v521 = vpop.permute.xlu0 %520
    %v523 = vsel %vm210, %v519, 0
    %v525 = vsel %vm214, %v521, 0
    %527 = vmatprep.subr.mxu0 0.0
    %528 = vmatpush1.msra.mxu0 %v525
    %529 = vmatprep.subr.mxu0 0.0
    %530 = vmatpush1.msra.mxu0 0.0
    %531 = vmatprep.subr.mxu0 0.0
    %532 = vmatpush1.msra.mxu0 0.0
    %533 = vmatprep.subr.mxu0 0.0
    %534 = vmatpush1.msra.mxu0 0.0
    %535 = vmatprep.subr.mxu0 0.0
    %536 = vmatpush1.msra.mxu0 0.0
    %537 = vmatprep.subr.mxu0 0.0
    %538 = vmatpush1.msra.mxu0 0.0
    %539 = vmatprep.subr.mxu0 0.0
    %540 = vmatpush1.msra.mxu0 0.0
    %541 = vmatprep.subr.mxu0 0.0
    %542 = vmatpush1.msra.mxu0 0.0
    %543 = vmatprep.subr.mxu0 0.0
    %544 = vmatpush1.msra.mxu0 0.0
    %545 = vmatprep.subr.mxu0 0.0
    %546 = vmatpush1.msra.mxu0 0.0
    %547 = vmatprep.subr.mxu0 0.0
    %548 = vmatpush1.msra.mxu0 0.0
    %549 = vmatprep.subr.mxu0 0.0
    %550 = vmatpush1.msra.mxu0 0.0
    %551 = vmatprep.subr.mxu0 0.0
    %552 = vmatpush1.msra.mxu0 0.0
    %553 = vmatprep.subr.mxu0 0.0
    %554 = vmatpush1.msra.mxu0 0.0
    %555 = vmatprep.subr.mxu0 0.0
    %556 = vmatpush1.msra.mxu0 0.0
    %557 = vmatprep.subr.mxu0 0.0
    %558 = vmatpush1.msra.mxu0 0.0
    %559 = vmatprep.subr.mxu0 0.0
    %560 = vmatpush1.msra.mxu0 0.0
    %561 = vmatprep.subr.mxu0 0.0
    %562 = vmatpush1.msra.mxu0 0.0
    %563 = vmatprep.subr.mxu0 0.0
    %564 = vmatpush1.msra.mxu0 0.0
    %565 = vmatprep.subr.mxu0 0.0
    %566 = vmatpush1.msra.mxu0 0.0
    %567 = vmatprep.subr.mxu0 0.0
    %568 = vmatpush1.msra.mxu0 0.0
    %569 = vmatprep.subr.mxu0 0.0
    %570 = vmatpush1.msra.mxu0 0.0
    %571 = vmatprep.subr.mxu0 0.0
    %572 = vmatpush1.msra.mxu0 0.0
    %573 = vmatprep.subr.mxu0 0.0
    %574 = vmatpush1.msra.mxu0 0.0
    %575 = vmatprep.subr.mxu0 0.0
    %576 = vmatpush1.msra.mxu0 0.0
    %577 = vmatprep.subr.mxu0 0.0
    %578 = vmatpush1.msra.mxu0 0.0
    %579 = vmatprep.subr.mxu0 0.0
    %580 = vmatpush1.msra.mxu0 0.0
    %581 = vmatprep.subr.mxu0 0.0
    %582 = vmatpush1.msra.mxu0 0.0
    %583 = vmatprep.subr.mxu0 0.0
    %584 = vmatpush1.msra.mxu0 0.0
    %585 = vmatprep.subr.mxu0 0.0
    %586 = vmatpush1.msra.mxu0 0.0
    %587 = vmatprep.subr.mxu0 0.0
    %588 = vmatpush1.msra.mxu0 0.0
    %589 = vmatprep.subr.mxu0 0.0
    %590 = vmatpush1.msra.mxu0 0.0
    %591 = vmatprep.mubr.f32.mxu0 0.0
    %592 = vmatmul.mubr.f32.gmra.mrb[0].mxu0 %v523
    %v593 = vpop.f32.mrb[0].mxu0
    %v594 = vadd.f32 0.0, %v593
    %v595 = vpop.f32.mrb[0].mxu0
    %596 = vdwg.mxu0
    %597 = vrot.lane.b32.xlu0 %v200, 100
    %v598 = vpop.permute.xlu0 %597
    %v599 = vsel %vm214, %v598, 0
    %601 = vmatprep.subr.mxu0 0.0
    %602 = vmatpush1.msra.mxu0 %v599
    %603 = vmatprep.subr.mxu0 0.0
    %604 = vmatpush1.msra.mxu0 0.0
    %605 = vmatprep.subr.mxu0 0.0
    %606 = vmatpush1.msra.mxu0 0.0
    %607 = vmatprep.subr.mxu0 0.0
    %608 = vmatpush1.msra.mxu0 0.0
    %609 = vmatprep.subr.mxu0 0.0
    %610 = vmatpush1.msra.mxu0 0.0
    %611 = vmatprep.subr.mxu0 0.0
    %612 = vmatpush1.msra.mxu0 0.0
    %613 = vmatprep.subr.mxu0 0.0
    %614 = vmatpush1.msra.mxu0 0.0
    %615 = vmatprep.subr.mxu0 0.0
    %616 = vmatpush1.msra.mxu0 0.0
    %617 = vmatprep.subr.mxu0 0.0
    %618 = vmatpush1.msra.mxu0 0.0
    %619 = vmatprep.subr.mxu0 0.0
    %620 = vmatpush1.msra.mxu0 0.0
    %621 = vmatprep.subr.mxu0 0.0
    %622 = vmatpush1.msra.mxu0 0.0
    %623 = vmatprep.subr.mxu0 0.0
    %624 = vmatpush1.msra.mxu0 0.0
    %625 = vmatprep.subr.mxu0 0.0
    %626 = vmatpush1.msra.mxu0 0.0
    %627 = vmatprep.subr.mxu0 0.0
    %628 = vmatpush1.msra.mxu0 0.0
    %629 = vmatprep.subr.mxu0 0.0
    %630 = vmatpush1.msra.mxu0 0.0
    %631 = vmatprep.subr.mxu0 0.0
    %632 = vmatpush1.msra.mxu0 0.0
    %633 = vmatprep.subr.mxu0 0.0
    %634 = vmatpush1.msra.mxu0 0.0
    %635 = vmatprep.subr.mxu0 0.0
    %636 = vmatpush1.msra.mxu0 0.0
    %637 = vmatprep.subr.mxu0 0.0
    %638 = vmatpush1.msra.mxu0 0.0
    %639 = vmatprep.subr.mxu0 0.0
    %640 = vmatpush1.msra.mxu0 0.0
    %641 = vmatprep.subr.mxu0 0.0
    %642 = vmatpush1.msra.mxu0 0.0
    %643 = vmatprep.subr.mxu0 0.0
    %644 = vmatpush1.msra.mxu0 0.0
    %645 = vmatprep.subr.mxu0 0.0
    %646 = vmatpush1.msra.mxu0 0.0
    %647 = vmatprep.subr.mxu0 0.0
    %648 = vmatpush1.msra.mxu0 0.0
    %649 = vmatprep.subr.mxu0 0.0
    %650 = vmatpush1.msra.mxu0 0.0
    %651 = vmatprep.subr.mxu0 0.0
    %652 = vmatpush1.msra.mxu0 0.0
    %653 = vmatprep.subr.mxu0 0.0
    %654 = vmatpush1.msra.mxu0 0.0
    %655 = vmatprep.subr.mxu0 0.0
    %656 = vmatpush1.msra.mxu0 0.0
    %657 = vmatprep.subr.mxu0 0.0
    %658 = vmatpush1.msra.mxu0 0.0
    %659 = vmatprep.subr.mxu0 0.0
    %660 = vmatpush1.msra.mxu0 0.0
    %661 = vmatprep.subr.mxu0 0.0
    %662 = vmatpush1.msra.mxu0 0.0
    %663 = vmatprep.subr.mxu0 0.0
    %664 = vmatpush1.msra.mxu0 0.0
    %665 = vmatprep.mubr.f32.mxu0 0.0
    %666 = vmatmul.mubr.f32.gmra.mrb[0].mxu0 %v523
    %v667 = vpop.f32.mrb[0].mxu0
    %v668 = vadd.f32 0.0, %v667
    %v669 = vpop.f32.mrb[0].mxu0
    %670 = vdwg.mxu0
    %v671 = vadd.f32 %v516, %v594
    %v672 = vadd.f32 %v517, %v668
    %vm673 = vcmp.gt.f32.partialorder %v671, 0.0
    %vm674 = vcmp.gt.f32.partialorder %v672, 0.0
    %675 = vset.pattern.permute.xlu0 1
    %676 = vperm.xlu0 %675, %v51
    %v677 = vpop.permute.xlu0 %676
    %v679 = vmul.f32 %v677, %v671
    %v680 = vmul.f32 %v677, %v672
    %v681 = vsel %vm673, %v671, %v679
    %v682 = vsel %vm674, %v672, %v680
    %vm683 = vcmask 113664
    %v684 = vsel %vm683, %v681, 0.0
    %685 = vadd.xlane.f32.xlu0 %v684
    %v686 = vpop.xlane.xlu0 %685
    %v687 = vsel %vm683, %v682, 0.0
    %688 = vadd.xlane.f32.xlu0 %v687
    %v689 = vpop.xlane.xlu0 %688
    %v690 = vadd.f32 %v686, %v689
    %v691 = vmul.f32 %v690, 0.035714287
    %v692 = vsub.f32 %v681, %v691
    %v693 = vsub.f32 %v682, %v691
    %v694 = vmul.f32 %v692, %v692
    %v695 = vmul.f32 %v693, %v693
    %v696 = vsel %vm683, %v694, 0.0
    %697 = vadd.xlane.f32.xlu0 %v696
    %v698 = vpop.xlane.xlu0 %697
    %v699 = vsel %vm683, %v695, 0.0
    %700 = vadd.xlane.f32.xlu0 %v699
    %v701 = vpop.xlane.xlu0 %700
    %v702 = vadd.f32 %v698, %v701
    %v703 = vmul.f32 %v702, 0.035714287
    %v704 = vadd.f32 %v703, 1e-05
    %v705 = vrsqrt.pop %v704
    %v706 = vmul.f32 %v705, %v51
    %708 = vset.pattern.permute.xlu0 2
    %709 = vperm.xlu0 %708, %v706
    %v710 = vpop.permute.xlu0 %709
    %v712 = vmul.f32 %v692, %v710
    %v713 = vmul.f32 %v693, %v710
    %714 = vset.pattern.permute.xlu0 3
    %715 = vperm.xlu0 %714, %v51
    %v716 = vpop.permute.xlu0 %715
    %v718 = vadd.f32 %v712, %v716
    %v719 = vadd.f32 %v713, %v716
    %720 = vset.pattern.permute.xlu0 4
    %721 = vperm.xlu0 %720, %v51
    %v722 = vpop.permute.xlu0 %721
    %v724 = vadd.f32 %v722, 0.0
    %v725 = vld [vmem:[#allocation5] sm:$0xff]
    %vm726 = vcmask 64512
    %v728 = vsel %vm726, %v725, 0
    %730 = vmatprep.subr.mxu0 0.0
    %731 = vmatpush1.msra.mxu0 %v718
    %732 = vmatprep.subr.mxu0 0.0
    %733 = vmatpush1.msra.mxu0 0.0
    %734 = vmatprep.subr.mxu0 0.0
    %735 = vmatpush1.msra.mxu0 0.0
    %736 = vmatprep.subr.mxu0 0.0
    %737 = vmatpush1.msra.mxu0 0.0
    %738 = vmatprep.subr.mxu0 0.0
    %739 = vmatpush1.msra.mxu0 0.0
    %740 = vmatprep.subr.mxu0 0.0
    %741 = vmatpush1.msra.mxu0 0.0
    %742 = vmatprep.subr.mxu0 0.0
    %743 = vmatpush1.msra.mxu0 0.0
    %744 = vmatprep.subr.mxu0 0.0
    %745 = vmatpush1.msra.mxu0 0.0
    %746 = vmatprep.subr.mxu0 0.0
    %747 = vmatpush1.msra.mxu0 0.0
    %748 = vmatprep.subr.mxu0 0.0
    %749 = vmatpush1.msra.mxu0 0.0
    %750 = vmatprep.subr.mxu0 0.0
    %751 = vmatpush1.msra.mxu0 0.0
    %752 = vmatprep.subr.mxu0 0.0
    %753 = vmatpush1.msra.mxu0 0.0
    %754 = vmatprep.subr.mxu0 0.0
    %755 = vmatpush1.msra.mxu0 0.0
    %756 = vmatprep.subr.mxu0 0.0
    %757 = vmatpush1.msra.mxu0 0.0
    %758 = vmatprep.subr.mxu0 0.0
    %759 = vmatpush1.msra.mxu0 0.0
    %760 = vmatprep.subr.mxu0 0.0
    %761 = vmatpush1.msra.mxu0 0.0
    %762 = vmatprep.subr.mxu0 0.0
    %763 = vmatpush1.msra.mxu0 0.0
    %764 = vmatprep.subr.mxu0 0.0
    %765 = vmatpush1.msra.mxu0 0.0
    %766 = vmatprep.subr.mxu0 0.0
    %767 = vmatpush1.msra.mxu0 0.0
    %768 = vmatprep.subr.mxu0 0.0
    %769 = vmatpush1.msra.mxu0 0.0
    %770 = vmatprep.subr.mxu0 0.0
    %771 = vmatpush1.msra.mxu0 0.0
    %772 = vmatprep.subr.mxu0 0.0
    %773 = vmatpush1.msra.mxu0 0.0
    %774 = vmatprep.subr.mxu0 0.0
    %775 = vmatpush1.msra.mxu0 0.0
    %776 = vmatprep.subr.mxu0 0.0
    %777 = vmatpush1.msra.mxu0 0.0
    %778 = vmatprep.subr.mxu0 0.0
    %779 = vmatpush1.msra.mxu0 0.0
    %780 = vmatprep.subr.mxu0 0.0
    %781 = vmatpush1.msra.mxu0 0.0
    %782 = vmatprep.subr.mxu0 0.0
    %783 = vmatpush1.msra.mxu0 0.0
    %784 = vmatprep.subr.mxu0 0.0
    %785 = vmatpush1.msra.mxu0 0.0
    %786 = vmatprep.subr.mxu0 0.0
    %787 = vmatpush1.msra.mxu0 0.0
    %788 = vmatprep.subr.mxu0 0.0
    %789 = vmatpush1.msra.mxu0 0.0
    %790 = vmatprep.subr.mxu0 0.0
    %791 = vmatpush1.msra.mxu0 0.0
    %792 = vmatprep.subr.mxu0 0.0
    %793 = vmatpush1.msra.mxu0 0.0
    %794 = vmatprep.mubr.f32.mxu0 0.0
    %795 = vmatmul.mubr.f32.gmra.mrb[0].mxu0 %v728
    %v796 = vpop.f32.mrb[0].mxu0
    %v797 = vadd.f32 0.0, %v796
    %v798 = vpop.f32.mrb[0].mxu0
    %799 = vdwg.mxu0
    %800 = vmatprep.subr.mxu0 0.0
    %801 = vmatpush1.msra.mxu0 %v719
    %802 = vmatprep.subr.mxu0 0.0
    %803 = vmatpush1.msra.mxu0 0.0
    %804 = vmatprep.subr.mxu0 0.0
    %805 = vmatpush1.msra.mxu0 0.0
    %806 = vmatprep.subr.mxu0 0.0
    %807 = vmatpush1.msra.mxu0 0.0
    %808 = vmatprep.subr.mxu0 0.0
    %809 = vmatpush1.msra.mxu0 0.0
    %810 = vmatprep.subr.mxu0 0.0
    %811 = vmatpush1.msra.mxu0 0.0
    %812 = vmatprep.subr.mxu0 0.0
    %813 = vmatpush1.msra.mxu0 0.0
    %814 = vmatprep.subr.mxu0 0.0
    %815 = vmatpush1.msra.mxu0 0.0
    %816 = vmatprep.subr.mxu0 0.0
    %817 = vmatpush1.msra.mxu0 0.0
    %818 = vmatprep.subr.mxu0 0.0
    %819 = vmatpush1.msra.mxu0 0.0
    %820 = vmatprep.subr.mxu0 0.0
    %821 = vmatpush1.msra.mxu0 0.0
    %822 = vmatprep.subr.mxu0 0.0
    %823 = vmatpush1.msra.mxu0 0.0
    %824 = vmatprep.subr.mxu0 0.0
    %825 = vmatpush1.msra.mxu0 0.0
    %826 = vmatprep.subr.mxu0 0.0
    %827 = vmatpush1.msra.mxu0 0.0
    %828 = vmatprep.subr.mxu0 0.0
    %829 = vmatpush1.msra.mxu0 0.0
    %830 = vmatprep.subr.mxu0 0.0
    %831 = vmatpush1.msra.mxu0 0.0
    %832 = vmatprep.subr.mxu0 0.0
    %833 = vmatpush1.msra.mxu0 0.0
    %834 = vmatprep.subr.mxu0 0.0
    %835 = vmatpush1.msra.mxu0 0.0
    %836 = vmatprep.subr.mxu0 0.0
    %837 = vmatpush1.msra.mxu0 0.0
    %838 = vmatprep.subr.mxu0 0.0
    %839 = vmatpush1.msra.mxu0 0.0
    %840 = vmatprep.subr.mxu0 0.0
    %841 = vmatpush1.msra.mxu0 0.0
    %842 = vmatprep.subr.mxu0 0.0
    %843 = vmatpush1.msra.mxu0 0.0
    %844 = vmatprep.subr.mxu0 0.0
    %845 = vmatpush1.msra.mxu0 0.0
    %846 = vmatprep.subr.mxu0 0.0
    %847 = vmatpush1.msra.mxu0 0.0
    %848 = vmatprep.subr.mxu0 0.0
    %849 = vmatpush1.msra.mxu0 0.0
    %850 = vmatprep.subr.mxu0 0.0
    %851 = vmatpush1.msra.mxu0 0.0
    %852 = vmatprep.subr.mxu0 0.0
    %853 = vmatpush1.msra.mxu0 0.0
    %854 = vmatprep.subr.mxu0 0.0
    %855 = vmatpush1.msra.mxu0 0.0
    %856 = vmatprep.subr.mxu0 0.0
    %857 = vmatpush1.msra.mxu0 0.0
    %858 = vmatprep.subr.mxu0 0.0
    %859 = vmatpush1.msra.mxu0 0.0
    %860 = vmatprep.subr.mxu0 0.0
    %861 = vmatpush1.msra.mxu0 0.0
    %862 = vmatprep.subr.mxu0 0.0
    %863 = vmatpush1.msra.mxu0 0.0
    %864 = vmatprep.mubr.f32.mxu0 0.0
    %865 = vmatmul.mubr.f32.gmra.mrb[0].mxu0 %v728
    %v866 = vpop.f32.mrb[0].mxu0
    %v867 = vadd.f32 0.0, %v866
    %v868 = vpop.f32.mrb[0].mxu0
    %869 = vdwg.mxu0
    %v870 = vadd.f32 %v724, %v797
    %v871 = vadd.f32 %v724, %v867
    %s872 = scalar_lea.vmem [#allocation5], 8
    %v873 = vld [vmem:[%s872] sm:$0xff]
    %875 = vrot.lane.b32.xlu0 %v718, 127
    %v876 = vpop.permute.xlu0 %875
    %v879 = vsel %vm726, %v873, 0
    %881 = vmatprep.subr.mxu0 0.0
    %882 = vmatpush1.msra.mxu0 %v876
    %883 = vmatprep.subr.mxu0 0.0
    %884 = vmatpush1.msra.mxu0 0.0
    %885 = vmatprep.subr.mxu0 0.0
    %886 = vmatpush1.msra.mxu0 0.0
    %887 = vmatprep.subr.mxu0 0.0
    %888 = vmatpush1.msra.mxu0 0.0
    %889 = vmatprep.subr.mxu0 0.0
    %890 = vmatpush1.msra.mxu0 0.0
    %891 = vmatprep.subr.mxu0 0.0
    %892 = vmatpush1.msra.mxu0 0.0
    %893 = vmatprep.subr.mxu0 0.0
    %894 = vmatpush1.msra.mxu0 0.0
    %895 = vmatprep.subr.mxu0 0.0
    %896 = vmatpush1.msra.mxu0 0.0
    %897 = vmatprep.subr.mxu0 0.0
    %898 = vmatpush1.msra.mxu0 0.0
    %899 = vmatprep.subr.mxu0 0.0
    %900 = vmatpush1.msra.mxu0 0.0
    %901 = vmatprep.subr.mxu0 0.0
    %902 = vmatpush1.msra.mxu0 0.0
    %903 = vmatprep.subr.mxu0 0.0
    %904 = vmatpush1.msra.mxu0 0.0
    %905 = vmatprep.subr.mxu0 0.0
    %906 = vmatpush1.msra.mxu0 0.0
    %907 = vmatprep.subr.mxu0 0.0
    %908 = vmatpush1.msra.mxu0 0.0
    %909 = vmatprep.subr.mxu0 0.0
    %910 = vmatpush1.msra.mxu0 0.0
    %911 = vmatprep.subr.mxu0 0.0
    %912 = vmatpush1.msra.mxu0 0.0
    %913 = vmatprep.subr.mxu0 0.0
    %914 = vmatpush1.msra.mxu0 0.0
    %915 = vmatprep.subr.mxu0 0.0
    %916 = vmatpush1.msra.mxu0 0.0
    %917 = vmatprep.subr.mxu0 0.0
    %918 = vmatpush1.msra.mxu0 0.0
    %919 = vmatprep.subr.mxu0 0.0
    %920 = vmatpush1.msra.mxu0 0.0
    %921 = vmatprep.subr.mxu0 0.0
    %922 = vmatpush1.msra.mxu0 0.0
    %923 = vmatprep.subr.mxu0 0.0
    %924 = vmatpush1.msra.mxu0 0.0
    %925 = vmatprep.subr.mxu0 0.0
    %926 = vmatpush1.msra.mxu0 0.0
    %927 = vmatprep.subr.mxu0 0.0
    %928 = vmatpush1.msra.mxu0 0.0
    %929 = vmatprep.subr.mxu0 0.0
    %930 = vmatpush1.msra.mxu0 0.0
    %931 = vmatprep.subr.mxu0 0.0
    %932 = vmatpush1.msra.mxu0 0.0
    %933 = vmatprep.subr.mxu0 0.0
    %934 = vmatpush1.msra.mxu0 0.0
    %935 = vmatprep.subr.mxu0 0.0
    %936 = vmatpush1.msra.mxu0 0.0
    %937 = vmatprep.subr.mxu0 0.0
    %938 = vmatpush1.msra.mxu0 0.0
    %939 = vmatprep.subr.mxu0 0.0
    %940 = vmatpush1.msra.mxu0 0.0
    %941 = vmatprep.subr.mxu0 0.0
    %942 = vmatpush1.msra.mxu0 0.0
    %943 = vmatprep.subr.mxu0 0.0
    %944 = vmatpush1.msra.mxu0 0.0
    %945 = vmatprep.mubr.f32.mxu0 0.0
    %946 = vmatmul.mubr.f32.gmra.mrb[0].mxu0 %v879
    %v947 = vpop.f32.mrb[0].mxu0
    %v948 = vadd.f32 0.0, %v947
    %v949 = vpop.f32.mrb[0].mxu0
    %950 = vdwg.mxu0
    %952 = vrot.lane.b32.xlu0 %v719, 127
    %v953 = vpop.permute.xlu0 %952
    %955 = vmatprep.subr.mxu0 0.0
    %956 = vmatpush1.msra.mxu0 %v953
    %957 = vmatprep.subr.mxu0 0.0
    %958 = vmatpush1.msra.mxu0 0.0
    %959 = vmatprep.subr.mxu0 0.0
    %960 = vmatpush1.msra.mxu0 0.0
    %961 = vmatprep.subr.mxu0 0.0
    %962 = vmatpush1.msra.mxu0 0.0
    %963 = vmatprep.subr.mxu0 0.0
    %964 = vmatpush1.msra.mxu0 0.0
    %965 = vmatprep.subr.mxu0 0.0
    %966 = vmatpush1.msra.mxu0 0.0
    %967 = vmatprep.subr.mxu0 0.0
    %968 = vmatpush1.msra.mxu0 0.0
    %969 = vmatprep.subr.mxu0 0.0
    %970 = vmatpush1.msra.mxu0 0.0
    %971 = vmatprep.subr.mxu0 0.0
    %972 = vmatpush1.msra.mxu0 0.0
    %973 = vmatprep.subr.mxu0 0.0
    %974 = vmatpush1.msra.mxu0 0.0
    %975 = vmatprep.subr.mxu0 0.0
    %976 = vmatpush1.msra.mxu0 0.0
    %977 = vmatprep.subr.mxu0 0.0
    %978 = vmatpush1.msra.mxu0 0.0
    %979 = vmatprep.subr.mxu0 0.0
    %980 = vmatpush1.msra.mxu0 0.0
    %981 = vmatprep.subr.mxu0 0.0
    %982 = vmatpush1.msra.mxu0 0.0
    %983 = vmatprep.subr.mxu0 0.0
    %984 = vmatpush1.msra.mxu0 0.0
    %985 = vmatprep.subr.mxu0 0.0
    %986 = vmatpush1.msra.mxu0 0.0
    %987 = vmatprep.subr.mxu0 0.0
    %988 = vmatpush1.msra.mxu0 0.0
    %989 = vmatprep.subr.mxu0 0.0
    %990 = vmatpush1.msra.mxu0 0.0
    %991 = vmatprep.subr.mxu0 0.0
    %992 = vmatpush1.msra.mxu0 0.0
    %993 = vmatprep.subr.mxu0 0.0
    %994 = vmatpush1.msra.mxu0 0.0
    %995 = vmatprep.subr.mxu0 0.0
    %996 = vmatpush1.msra.mxu0 0.0
    %997 = vmatprep.subr.mxu0 0.0
    %998 = vmatpush1.msra.mxu0 0.0
    %999 = vmatprep.subr.mxu0 0.0
    %1000 = vmatpush1.msra.mxu0 0.0
    %1001 = vmatprep.subr.mxu0 0.0
    %1002 = vmatpush1.msra.mxu0 0.0
    %1003 = vmatprep.subr.mxu0 0.0
    %1004 = vmatpush1.msra.mxu0 0.0
    %1005 = vmatprep.subr.mxu0 0.0
    %1006 = vmatpush1.msra.mxu0 0.0
    %1007 = vmatprep.subr.mxu0 0.0
    %1008 = vmatpush1.msra.mxu0 0.0
    %1009 = vmatprep.subr.mxu0 0.0
    %1010 = vmatpush1.msra.mxu0 0.0
    %1011 = vmatprep.subr.mxu0 0.0
    %1012 = vmatpush1.msra.mxu0 0.0
    %1013 = vmatprep.subr.mxu0 0.0
    %1014 = vmatpush1.msra.mxu0 0.0
    %1015 = vmatprep.subr.mxu0 0.0
    %1016 = vmatpush1.msra.mxu0 0.0
    %1017 = vmatprep.subr.mxu0 0.0
    %1018 = vmatpush1.msra.mxu0 0.0
    %1019 = vmatprep.mubr.f32.mxu0 0.0
    %1020 = vmatmul.mubr.f32.gmra.mrb[0].mxu0 %v879
    %v1021 = vpop.f32.mrb[0].mxu0
    %v1022 = vadd.f32 0.0, %v1021
    %v1023 = vpop.f32.mrb[0].mxu0
    %1024 = vdwg.mxu0
    %v1025 = vadd.f32 %v870, %v948
    %v1026 = vadd.f32 %v871, %v1022
    %s1027 = scalar_lea.vmem [#allocation5], 16
    %v1028 = vld [vmem:[%s1027] sm:$0xff]
    %1029 = vrot.lane.b32.xlu0 %v718, 126
    %v1030 = vpop.permute.xlu0 %1029
    %v1033 = vsel %vm726, %v1028, 0
    %1035 = vmatprep.subr.mxu0 0.0
    %1036 = vmatpush1.msra.mxu0 %v1030
    %1037 = vmatprep.subr.mxu0 0.0
    %1038 = vmatpush1.msra.mxu0 0.0
    %1039 = vmatprep.subr.mxu0 0.0
    %1040 = vmatpush1.msra.mxu0 0.0
    %1041 = vmatprep.subr.mxu0 0.0
    %1042 = vmatpush1.msra.mxu0 0.0
    %1043 = vmatprep.subr.mxu0 0.0
    %1044 = vmatpush1.msra.mxu0 0.0
    %1045 = vmatprep.subr.mxu0 0.0
    %1046 = vmatpush1.msra.mxu0 0.0
    %1047 = vmatprep.subr.mxu0 0.0
    %1048 = vmatpush1.msra.mxu0 0.0
    %1049 = vmatprep.subr.mxu0 0.0
    %1050 = vmatpush1.msra.mxu0 0.0
    %1051 = vmatprep.subr.mxu0 0.0
    %1052 = vmatpush1.msra.mxu0 0.0
    %1053 = vmatprep.subr.mxu0 0.0
    %1054 = vmatpush1.msra.mxu0 0.0
    %1055 = vmatprep.subr.mxu0 0.0
    %1056 = vmatpush1.msra.mxu0 0.0
    %1057 = vmatprep.subr.mxu0 0.0
    %1058 = vmatpush1.msra.mxu0 0.0
    %1059 = vmatprep.subr.mxu0 0.0
    %1060 = vmatpush1.msra.mxu0 0.0
    %1061 = vmatprep.subr.mxu0 0.0
    %1062 = vmatpush1.msra.mxu0 0.0
    %1063 = vmatprep.subr.mxu0 0.0
    %1064 = vmatpush1.msra.mxu0 0.0
    %1065 = vmatprep.subr.mxu0 0.0
    %1066 = vmatpush1.msra.mxu0 0.0
    %1067 = vmatprep.subr.mxu0 0.0
    %1068 = vmatpush1.msra.mxu0 0.0
    %1069 = vmatprep.subr.mxu0 0.0
    %1070 = vmatpush1.msra.mxu0 0.0
    %1071 = vmatprep.subr.mxu0 0.0
    %1072 = vmatpush1.msra.mxu0 0.0
    %1073 = vmatprep.subr.mxu0 0.0
    %1074 = vmatpush1.msra.mxu0 0.0
    %1075 = vmatprep.subr.mxu0 0.0
    %1076 = vmatpush1.msra.mxu0 0.0
    %1077 = vmatprep.subr.mxu0 0.0
    %1078 = vmatpush1.msra.mxu0 0.0
    %1079 = vmatprep.subr.mxu0 0.0
    %1080 = vmatpush1.msra.mxu0 0.0
    %1081 = vmatprep.subr.mxu0 0.0
    %1082 = vmatpush1.msra.mxu0 0.0
    %1083 = vmatprep.subr.mxu0 0.0
    %1084 = vmatpush1.msra.mxu0 0.0
    %1085 = vmatprep.subr.mxu0 0.0
    %1086 = vmatpush1.msra.mxu0 0.0
    %1087 = vmatprep.subr.mxu0 0.0
    %1088 = vmatpush1.msra.mxu0 0.0
    %1089 = vmatprep.subr.mxu0 0.0
    %1090 = vmatpush1.msra.mxu0 0.0
    %1091 = vmatprep.subr.mxu0 0.0
    %1092 = vmatpush1.msra.mxu0 0.0
    %1093 = vmatprep.subr.mxu0 0.0
    %1094 = vmatpush1.msra.mxu0 0.0
    %1095 = vmatprep.subr.mxu0 0.0
    %1096 = vmatpush1.msra.mxu0 0.0
    %1097 = vmatprep.subr.mxu0 0.0
    %1098 = vmatpush1.msra.mxu0 0.0
    %1099 = vmatprep.mubr.f32.mxu0 0.0
    %1100 = vmatmul.mubr.f32.gmra.mrb[0].mxu0 %v1033
    %v1101 = vpop.f32.mrb[0].mxu0
    %v1102 = vadd.f32 0.0, %v1101
    %v1103 = vpop.f32.mrb[0].mxu0
    %1104 = vdwg.mxu0
    %1105 = vrot.lane.b32.xlu0 %v719, 126
    %v1106 = vpop.permute.xlu0 %1105
    %1108 = vmatprep.subr.mxu0 0.0
    %1109 = vmatpush1.msra.mxu0 %v1106
    %1110 = vmatprep.subr.mxu0 0.0
    %1111 = vmatpush1.msra.mxu0 0.0
    %1112 = vmatprep.subr.mxu0 0.0
    %1113 = vmatpush1.msra.mxu0 0.0
    %1114 = vmatprep.subr.mxu0 0.0
    %1115 = vmatpush1.msra.mxu0 0.0
    %1116 = vmatprep.subr.mxu0 0.0
    %1117 = vmatpush1.msra.mxu0 0.0
    %1118 = vmatprep.subr.mxu0 0.0
    %1119 = vmatpush1.msra.mxu0 0.0
    %1120 = vmatprep.subr.mxu0 0.0
    %1121 = vmatpush1.msra.mxu0 0.0
    %1122 = vmatprep.subr.mxu0 0.0
    %1123 = vmatpush1.msra.mxu0 0.0
    %1124 = vmatprep.subr.mxu0 0.0
    %1125 = vmatpush1.msra.mxu0 0.0
    %1126 = vmatprep.subr.mxu0 0.0
    %1127 = vmatpush1.msra.mxu0 0.0
    %1128 = vmatprep.subr.mxu0 0.0
    %1129 = vmatpush1.msra.mxu0 0.0
    %1130 = vmatprep.subr.mxu0 0.0
    %1131 = vmatpush1.msra.mxu0 0.0
    %1132 = vmatprep.subr.mxu0 0.0
    %1133 = vmatpush1.msra.mxu0 0.0
    %1134 = vmatprep.subr.mxu0 0.0
    %1135 = vmatpush1.msra.mxu0 0.0
    %1136 = vmatprep.subr.mxu0 0.0
    %1137 = vmatpush1.msra.mxu0 0.0
    %1138 = vmatprep.subr.mxu0 0.0
    %1139 = vmatpush1.msra.mxu0 0.0
    %1140 = vmatprep.subr.mxu0 0.0
    %1141 = vmatpush1.msra.mxu0 0.0
    %1142 = vmatprep.subr.mxu0 0.0
    %1143 = vmatpush1.msra.mxu0 0.0
    %1144 = vmatprep.subr.mxu0 0.0
    %1145 = vmatpush1.msra.mxu0 0.0
    %1146 = vmatprep.subr.mxu0 0.0
    %1147 = vmatpush1.msra.mxu0 0.0
    %1148 = vmatprep.subr.mxu0 0.0
    %1149 = vmatpush1.msra.mxu0 0.0
    %1150 = vmatprep.subr.mxu0 0.0
    %1151 = vmatpush1.msra.mxu0 0.0
    %1152 = vmatprep.subr.mxu0 0.0
    %1153 = vmatpush1.msra.mxu0 0.0
    %1154 = vmatprep.subr.mxu0 0.0
    %1155 = vmatpush1.msra.mxu0 0.0
    %1156 = vmatprep.subr.mxu0 0.0
    %1157 = vmatpush1.msra.mxu0 0.0
    %1158 = vmatprep.subr.mxu0 0.0
    %1159 = vmatpush1.msra.mxu0 0.0
    %1160 = vmatprep.subr.mxu0 0.0
    %1161 = vmatpush1.msra.mxu0 0.0
    %1162 = vmatprep.subr.mxu0 0.0
    %1163 = vmatpush1.msra.mxu0 0.0
    %1164 = vmatprep.subr.mxu0 0.0
    %1165 = vmatpush1.msra.mxu0 0.0
    %1166 = vmatprep.subr.mxu0 0.0
    %1167 = vmatpush1.msra.mxu0 0.0
    %1168 = vmatprep.subr.mxu0 0.0
    %1169 = vmatpush1.msra.mxu0 0.0
    %1170 = vmatprep.subr.mxu0 0.0
    %1171 = vmatpush1.msra.mxu0 0.0
    %1172 = vmatprep.mubr.f32.mxu0 0.0
    %1173 = vmatmul.mubr.f32.gmra.mrb[0].mxu0 %v1033
    %v1174 = vpop.f32.mrb[0].mxu0
    %v1175 = vadd.f32 0.0, %v1174
    %v1176 = vpop.f32.mrb[0].mxu0
    %1177 = vdwg.mxu0
    %v1178 = vadd.f32 %v1025, %v1102
    %v1179 = vadd.f32 %v1026, %v1175
    %vm1180 = vcmp.gt.f32.partialorder %v1178, 0.0
    %vm1181 = vcmp.gt.f32.partialorder %v1179, 0.0
    %1182 = vset.pattern.permute.xlu0 5
    %1183 = vperm.xlu0 %1182, %v51
    %v1184 = vpop.permute.xlu0 %1183
    %v1186 = vmul.f32 %v1184, %v1178
    %v1187 = vmul.f32 %v1184, %v1179
    %v1188 = vsel %vm1180, %v1178, %v1186
    %v1189 = vsel %vm1181, %v1179, %v1187
    %vm1190 = vcmask 97280
    %v1191 = vsel %vm1190, %v1188, 0.0
    %1192 = vadd.xlane.f32.xlu0 %v1191
    %v1193 = vpop.xlane.xlu0 %1192
    %v1194 = vsel %vm1190, %v1189, 0.0
    %1195 = vadd.xlane.f32.xlu0 %v1194
    %v1196 = vpop.xlane.xlu0 %1195
    %v1197 = vadd.f32 %v1193, %v1196
    %v1198 = vmul.f32 %v1197, 0.041666668
    %v1199 = vsub.f32 %v1188, %v1198
    %v1200 = vsub.f32 %v1189, %v1198
    %v1201 = vmul.f32 %v1199, %v1199
    %v1202 = vmul.f32 %v1200, %v1200
    %v1203 = vsel %vm1190, %v1201, 0.0
    %1204 = vadd.xlane.f32.xlu0 %v1203
    %v1205 = vpop.xlane.xlu0 %1204
    %v1206 = vsel %vm1190, %v1202, 0.0
    %1207 = vadd.xlane.f32.xlu0 %v1206
    %v1208 = vpop.xlane.xlu0 %1207
    %v1209 = vadd.f32 %v1205, %v1208
    %v1210 = vmul.f32 %v1209, 0.041666668
    %v1211 = vadd.f32 %v1210, 1e-05
    %v1212 = vrsqrt.pop %v1211
    %v1213 = vmul.f32 %v1212, %v51
    %1215 = vset.pattern.permute.xlu0 6
    %1216 = vperm.xlu0 %1215, %v1213
    %v1217 = vpop.permute.xlu0 %1216
    %v1219 = vmul.f32 %v1199, %v1217
    %v1220 = vmul.f32 %v1200, %v1217
    %1221 = vset.pattern.permute.xlu0 7
    %1222 = vperm.xlu0 %1221, %v51
    %v1223 = vpop.permute.xlu0 %1222
    %v1225 = vadd.f32 %v1219, %v1223
    %v1226 = vadd.f32 %v1220, %v1223
    %1227 = vst.msk [vmem:[#allocation7] sm:$0xff] %vm1190, %v1225
    %1228 = vst.msk [vmem:[#allocation7 + $0x8] sm:$0xff] %vm1190, %v1226
    // Predicated region
    $region30: #{tpu_custom_call.1} parent=1 // pred_check
      _
    $region31: #{tpu_custom_call.1} parent=1 // pred_check_branch
      %1230 = sbr.rel (0) target = $region33
    $region32: #{tpu_custom_call.1} parent=1 // pred_region
      %s1232 = ssub.s32 256, 256
      %1233 = vsyncadd [#allocation4], %s1232
      %s1234 = sshll.u32 [#allocation7], 4
      %s1235 = int_to_ptr.vmem [resolvable:$true] %s1234
      %1240 = dma.vmem_to_hbm [thread:$0]  %s1235, 256, %s5, [#allocation4], 128, 128, 8
    $region33: #{tpu_custom_call.1} parent=1 // pred_fallthru
      _
    // Predicated region
    $region34: #{tpu_custom_call.1} parent=1 // pred_check
      _
    $region35: #{tpu_custom_call.1} parent=1 // pred_check_branch
      %1242 = sbr.rel (0) target = $region37
    $region36: #{tpu_custom_call.1} parent=1 // pred_region
      %1243 = dma.done [#allocation4], 256
    $region37: #{tpu_custom_call.1} parent=1 // pred_fallthru
      _
    %1244 = vsyncpa [#allocation3], 1
    %1245 = vsyncpa [#allocation6], 1
    %1246 = vsyncpa [#allocation4], 1

</llo_original>
